<compile_context>
chip_gen: v6e
topology: v6e:2x2x1
jax: 0.10.0
libtpu: 0.0.40
codegen_flags: <defaults>
</compile_context>

<pallas_src>
import math

import jax
import jax.numpy as jnp
from jax.experimental import pallas as pl
from jax.experimental.pallas import tpu as pltpu

NEG_INF = -1e30  # same constant as masked_softmax in the SQuAD reference code


def _bidaf_kernel(cw_ref, qw_ref, cqw_ref, b_ref,
                  c_ref, q_ref, cm_ref, qm_ref, out_ref):
    mm_dtype = c_ref.dtype           # bf16 callers -> native bf16 MXU, f32 accum
    Hp = c_ref.shape[-1]             # padded hidden (multiple of 128)

    c_in = c_ref[...]                                   # (Bt, Lc, Hp)
    q_in = q_ref[...]                                   # (Bt, Lq, Hp)
    c32 = c_in.astype(jnp.float32)
    q32 = q_in.astype(jnp.float32)
    cw = cw_ref[...]                                    # (1, Hp)  f32
    qw = qw_ref[...]                                    # (1, Hp)  f32
    cqw = cqw_ref[...]                                  # (1, Hp)  f32
    bias = b_ref[...]                                   # (1, 1)   f32
    cm = cm_ref[...]                                    # (Bt, Lc, 1) f32
    qm = qm_ref[...]                                    # (Bt, 1, Lq) f32

    # ---- similarity matrix: rank-1 terms s0/s1 on VPU+XLU, only s2 hits the MXU.
    s0 = jnp.sum(c32 * cw, axis=-1, keepdims=True)      # (Bt, Lc, 1)
    s1 = jnp.sum(q32 * qw, axis=-1)[:, None, :]         # (Bt, 1, Lq)
    s2 = jnp.einsum('bld,bmd->blm',
                    (c32 * cqw).astype(mm_dtype), q_in,
                    preferred_element_type=jnp.float32)  # (Bt, Lc, Lq)
    s = (s0 + bias) + s1 + s2                            # (Bt, Lc, Lq)

    # ---- masked softmax over the query axis (torch dim=2)
    sq = jnp.where(qm > 0.0, s, NEG_INF)
    p1 = jnp.exp(sq - jnp.max(sq, axis=2, keepdims=True))
    p1 = p1 * pl.reciprocal(jnp.sum(p1, axis=2, keepdims=True), approx=True)

    # ---- masked softmax over the context axis (torch dim=1)
    sc = jnp.where(cm > 0.0, s, NEG_INF)
    p2 = jnp.exp(sc - jnp.max(sc, axis=1, keepdims=True))
    p2 = p2 * pl.reciprocal(jnp.sum(p2, axis=1, keepdims=True), approx=True)

    p1m = p1.astype(mm_dtype)

    # a = p1 @ q       (context-to-query attention)
    a = jnp.einsum('blm,bmd->bld', p1m, q_in,
                   preferred_element_type=jnp.float32)   # (Bt, Lc, Hp)

    # b = p1 @ (p2^T @ c)   -- reassociated, no (Lc, Lc) intermediate
    t = jnp.einsum('blm,bld->bmd', p2.astype(mm_dtype), c_in,
                   preferred_element_type=jnp.float32)   # (Bt, Lq, Hp)
    b = jnp.einsum('blm,bmd->bld', p1m, t.astype(mm_dtype),
                   preferred_element_type=jnp.float32)   # (Bt, Lc, Hp)

    # ---- four 128-lane-aligned sliced stores; no (Lc, 4H) concat temporary.
    odt = out_ref.dtype
    out_ref[:, :, pl.ds(0 * Hp, Hp)] = c_in.astype(odt)
    out_ref[:, :, pl.ds(1 * Hp, Hp)] = a.astype(odt)
    out_ref[:, :, pl.ds(2 * Hp, Hp)] = (c32 * a).astype(odt)
    out_ref[:, :, pl.ds(3 * Hp, Hp)] = (c32 * b).astype(odt)


def _round_up(x, m):
    return ((x + m - 1) // m) * m


def _pad_to_shape(x, shape):
    pads = [(0, t - s) for s, t in zip(x.shape, shape)]
    if all(p == (0, 0) for p in pads):
        return x
    return jnp.pad(x, pads)


def _vmem_capacity_bytes():
    # Per-generation VMEM (v5e/v6e: 128 MiB, v7x: 64 MiB). Conservative fallback.
    try:
        return int(pltpu.get_tpu_info().vmem_capacity_bytes)
    except Exception:
        return 64 * 1024 * 1024


def bidaf_attention(c, q, c_mask, q_mask, c_weight, q_weight, cq_weight, bias,
                    *, block_b=None):
    """c: (B, Lc, H), q: (B, Lq, H), c_mask: (B, Lc), q_mask: (B, Lq).

    Returns (B, Lc, 4*H) == concat([c, a, c*a, c*b], axis=-1).
    """
    B, Lc, H = c.shape
    Lq = q.shape[1]
    out_dtype = c.dtype

    # Lane/sublane-friendly padding (masked softmax neutralizes padded q/c rows).
    Hp = _round_up(H, 128)
    Lqp = _round_up(Lq, 128)
    Lcp = _round_up(Lc, 8)

    cap = _vmem_capacity_bytes()
    vmem_limit = int(min((cap * 3) // 4, 100 * 1024 * 1024))

    if block_b is None:
        # Rough per-batch-element footprint (bytes, f32-conservative):
        # double-buffered c/q/out blocks + f32 similarity/softmax/attention temps.
        per_elem = 4 * (2 * (Lcp * Hp + Lqp * Hp + 4 * Lcp * Hp)
                        + 4 * Lcp * Lqp
                        + 3 * Lcp * Hp + Lqp * Hp)
        block_b = max(1, min(B, (vmem_limit // 2) // per_elem))
    Bt = int(block_b)
    Bp = _round_up(B, Bt)

    cp = _pad_to_shape(c, (Bp, Lcp, Hp))
    qp = _pad_to_shape(q, (Bp, Lqp, Hp))
    cm = _pad_to_shape(c_mask.astype(jnp.float32), (Bp, Lcp)).reshape(Bp, Lcp, 1)
    qm = _pad_to_shape(q_mask.astype(jnp.float32), (Bp, Lqp)).reshape(Bp, 1, Lqp)

    cw = _pad_to_shape(c_weight.reshape(1, H).astype(jnp.float32), (1, Hp))
    qw = _pad_to_shape(q_weight.reshape(1, H).astype(jnp.float32), (1, Hp))
    cqw = _pad_to_shape(cq_weight.reshape(1, H).astype(jnp.float32), (1, Hp))
    b2 = bias.reshape(1, 1).astype(jnp.float32)

    grid_spec = pltpu.PrefetchScalarGridSpec(
        num_scalar_prefetch=0,
        grid=(Bp // Bt,),
        in_specs=[
            pl.BlockSpec((1, Hp), lambda i: (0, 0)),           # c_weight^T
            pl.BlockSpec((1, Hp), lambda i: (0, 0)),           # q_weight^T
            pl.BlockSpec((1, Hp), lambda i: (0, 0)),           # cq_weight
            pl.BlockSpec((1, 1), lambda i: (0, 0)),            # bias
            pl.BlockSpec((Bt, Lcp, Hp), lambda i: (i, 0, 0)),  # c
            pl.BlockSpec((Bt, Lqp, Hp), lambda i: (i, 0, 0)),  # q
            pl.BlockSpec((Bt, Lcp, 1), lambda i: (i, 0, 0)),   # c_mask
            pl.BlockSpec((Bt, 1, Lqp), lambda i: (i, 0, 0)),   # q_mask
        ],
        out_specs=pl.BlockSpec((Bt, Lcp, 4 * Hp), lambda i: (i, 0, 0)),
    )

    out_p = pl.pallas_call(
        _bidaf_kernel,
        out_shape=jax.ShapeDtypeStruct((Bp, Lcp, 4 * Hp), out_dtype),
        grid_spec=grid_spec,
        compiler_params=pltpu.CompilerParams(
            dimension_semantics=("parallel",),
            vmem_limit_bytes=vmem_limit),
    )(cw, qw, cqw, b2, cp, qp, cm, qm)

    # Strip padding: (Bp, Lcp, 4*Hp) -> (B, Lc, 4*H).
    out = out_p[:B, :Lc, :]
    if Hp != H:
        out = out.reshape(B, Lc, 4, Hp)[..., :H].reshape(B, Lc, 4 * H)
    return out


def _xavier_uniform(key, shape):
    """Deterministic xavier_uniform_ matching torch fan-in/fan-out rules."""
    if len(shape) == 2:
        fan_in, fan_out = shape[1], shape[0]
    else:
        rf = int(math.prod(shape[2:]))
        fan_in, fan_out = shape[1] * rf, shape[0] * rf
    bound = math.sqrt(6.0 / (fan_in + fan_out))
    return jax.random.uniform(key, shape, jnp.float32, -bound, bound)


def _reference(c, q, c_mask, q_mask, c_weight, q_weight, cq_weight, bias):
    """Pure-JAX reference mirroring the PyTorch forward (eval mode)."""
    B, Lc, H = c.shape
    Lq = q.shape[1]
    s0 = jnp.matmul(c, c_weight)                       # (B, Lc, 1)
    s1 = jnp.swapaxes(jnp.matmul(q, q_weight), 1, 2)   # (B, 1, Lq)
    s2 = jnp.matmul(c * cq_weight, jnp.swapaxes(q, 1, 2))
    s = s0 + s1 + s2 + bias                            # (B, Lc, Lq)
    qm = q_mask.astype(jnp.float32).reshape(B, 1, Lq)
    cm = c_mask.astype(jnp.float32).reshape(B, Lc, 1)
    s1m = qm * s + (1 - qm) * NEG_INF
    s2m = cm * s + (1 - cm) * NEG_INF
    p1 = jax.nn.softmax(s1m, axis=2)
    p2 = jax.nn.softmax(s2m, axis=1)
    a = jnp.matmul(p1, q)
    b = jnp.matmul(jnp.matmul(p1, jnp.swapaxes(p2, 1, 2)), c)
    return jnp.concatenate([c, a, c * a, c * b], axis=2)


if __name__ == "__main__":
    B, Lc, Lq, H = 2, 16, 8, 32  # hidden feature size = 32

    key = jax.random.PRNGKey(0)
    k_c, k_q, k_w1, k_w2, k_w3 = jax.random.split(key, 5)

    c = jax.random.normal(k_c, (B, Lc, H), jnp.float32)
    q = jax.random.normal(k_q, (B, Lq, H), jnp.float32)

    # Valid-length style masks (some positions masked out).
    c_lens = jnp.array([16, 11], jnp.int32)
    q_lens = jnp.array([8, 5], jnp.int32)
    c_mask = (jnp.arange(Lc)[None, :] < c_lens[:, None]).astype(jnp.float32)
    q_mask = (jnp.arange(Lq)[None, :] < q_lens[:, None]).astype(jnp.float32)

    # Parameters (deterministic xavier_uniform, zero bias), shapes per __init__.
    c_weight = _xavier_uniform(k_w1, (H, 1))
    q_weight = _xavier_uniform(k_w2, (H, 1))
    cq_weight = _xavier_uniform(k_w3, (1, 1, H))
    bias = jnp.zeros((1,), jnp.float32)

    out = bidaf_attention(c, q, c_mask, q_mask,
                          c_weight, q_weight, cq_weight, bias)
    out = jax.block_until_ready(out)

    ref = _reference(c, q, c_mask, q_mask, c_weight, q_weight, cq_weight, bias)
    assert out.shape == (B, Lc, 4 * H), out.shape
    # pl.reciprocal(approx=True) in the softmax normalization introduces
    # ~1e-3-level relative error (acceptable for inference), hence the tolerance.
    assert jnp.allclose(out, ref, atol=2e-2, rtol=2e-2), \
        float(jnp.max(jnp.abs(out - ref)))

    print("KERNEL_OK")
</pallas_src>

<mosaic_0001>
module attributes {stable_mosaic.version = 11 : i64} {
  func.func @_bidaf_kernel(%arg0: i32, %arg1: memref<1x128xf32, #tpu.memory_space<vmem>>, %arg2: memref<1x128xf32, #tpu.memory_space<vmem>>, %arg3: memref<1x128xf32, #tpu.memory_space<vmem>>, %arg4: memref<1x1xf32, #tpu.memory_space<vmem>>, %arg5: memref<2x16x128xf32, #tpu.memory_space<vmem>>, %arg6: memref<2x128x128xf32, #tpu.memory_space<vmem>>, %arg7: memref<2x16x1xf32, #tpu.memory_space<vmem>>, %arg8: memref<2x1x128xf32, #tpu.memory_space<vmem>>, %arg9: memref<2x16x512xf32, #tpu.memory_space<vmem>>) attributes {dimension_semantics = [#tpu.dimension_semantics<parallel>], iteration_bounds = array<i64: 1>, scalar_prefetch = 0 : i64, scratch_operands = 0 : i64, tpu.core_type = #tpu.core_type<tc>, window_params = [{pipeline_mode = #tpu.pipeline_mode<synchronous>, transform_indices = @transform_0, window_bounds = array<i64: 1, 128>}, {pipeline_mode = #tpu.pipeline_mode<synchronous>, transform_indices = @transform_1, window_bounds = array<i64: 1, 128>}, {pipeline_mode = #tpu.pipeline_mode<synchronous>, transform_indices = @transform_2, window_bounds = array<i64: 1, 128>}, {pipeline_mode = #tpu.pipeline_mode<synchronous>, transform_indices = @transform_3, window_bounds = array<i64: 1, 1>}, {transform_indices = @transform_4, window_bounds = array<i64: 2, 16, 128>}, {transform_indices = @transform_5, window_bounds = array<i64: 2, 128, 128>}, {transform_indices = @transform_6, window_bounds = array<i64: 2, 16, 1>}, {transform_indices = @transform_7, window_bounds = array<i64: 2, 1, 128>}, {transform_indices = @transform_8, window_bounds = array<i64: 2, 16, 512>}]} {
    %c0 = arith.constant 0 : index
    %c0_0 = arith.constant 0 : index
    %c0_1 = arith.constant 0 : index
    %0 = vector.load %arg5[%c0, %c0_0, %c0_1] : memref<2x16x128xf32, #tpu.memory_space<vmem>>, vector<2x16x128xf32>
    %c0_2 = arith.constant 0 : index
    %c0_3 = arith.constant 0 : index
    %c0_4 = arith.constant 0 : index
    %1 = vector.load %arg6[%c0_2, %c0_3, %c0_4] : memref<2x128x128xf32, #tpu.memory_space<vmem>>, vector<2x128x128xf32>
    %c0_5 = arith.constant 0 : index
    %c0_6 = arith.constant 0 : index
    %2 = vector.load %arg1[%c0_5, %c0_6] : memref<1x128xf32, #tpu.memory_space<vmem>>, vector<1x128xf32>
    %c0_7 = arith.constant 0 : index
    %c0_8 = arith.constant 0 : index
    %3 = vector.load %arg2[%c0_7, %c0_8] : memref<1x128xf32, #tpu.memory_space<vmem>>, vector<1x128xf32>
    %c0_9 = arith.constant 0 : index
    %c0_10 = arith.constant 0 : index
    %4 = vector.load %arg3[%c0_9, %c0_10] : memref<1x128xf32, #tpu.memory_space<vmem>>, vector<1x128xf32>
    %c0_11 = arith.constant 0 : index
    %c0_12 = arith.constant 0 : index
    %5 = vector.load %arg4[%c0_11, %c0_12] : memref<1x1xf32, #tpu.memory_space<vmem>>, vector<1x1xf32>
    %c0_13 = arith.constant 0 : index
    %c0_14 = arith.constant 0 : index
    %c0_15 = arith.constant 0 : index
    %6 = vector.load %arg7[%c0_13, %c0_14, %c0_15] : memref<2x16x1xf32, #tpu.memory_space<vmem>>, vector<2x16x1xf32>
    %c0_16 = arith.constant 0 : index
    %c0_17 = arith.constant 0 : index
    %c0_18 = arith.constant 0 : index
    %7 = vector.load %arg8[%c0_16, %c0_17, %c0_18] : memref<2x1x128xf32, #tpu.memory_space<vmem>>, vector<2x1x128xf32>
    %8 = vector.shape_cast %2 : vector<1x128xf32> to vector<1x1x128xf32>
    %9 = vector.broadcast %8 : vector<1x1x128xf32> to vector<2x16x128xf32>
    %10 = arith.mulf %0, %9 : vector<2x16x128xf32>
    %cst = arith.constant dense<0.000000e+00> : vector<2x16xf32>
    %11 = vector.multi_reduction <add>, %10, %cst [2] : vector<2x16x128xf32> to vector<2x16xf32>
    %12 = vector.shape_cast %11 : vector<2x16xf32> to vector<2x16x1xf32>
    %13 = vector.shape_cast %3 : vector<1x128xf32> to vector<1x1x128xf32>
    %14 = vector.broadcast %13 : vector<1x1x128xf32> to vector<2x128x128xf32>
    %15 = arith.mulf %1, %14 : vector<2x128x128xf32>
    %cst_19 = arith.constant dense<0.000000e+00> : vector<2x128xf32>
    %16 = vector.multi_reduction <add>, %15, %cst_19 [2] : vector<2x128x128xf32> to vector<2x128xf32>
    %17 = vector.shape_cast %16 : vector<2x128xf32> to vector<2x1x128xf32>
    %18 = vector.shape_cast %4 : vector<1x128xf32> to vector<1x1x128xf32>
    %19 = vector.broadcast %18 : vector<1x1x128xf32> to vector<2x16x128xf32>
    %20 = arith.mulf %0, %19 : vector<2x16x128xf32>
    "tpu.trace_start"() <{level = 10 : i32, message = "bld,bmd->blm"}> : () -> ()
    %cst_20 = arith.constant dense<0.000000e+00> : vector<2x16x128xf32>
    %21 = tpu.matmul %20, %1, %cst_20 {dimension_numbers = #tpu.dot_dimension_numbers<[2], [2], [1], [1], [0, 0, 0, 1, 1, 1], [0], [0]>} : vector<2x16x128xf32>, vector<2x128x128xf32>, vector<2x16x128xf32> -> vector<2x16x128xf32>
    "tpu.trace_stop"() : () -> ()
    %22 = vector.shape_cast %5 : vector<1x1xf32> to vector<1x1x1xf32>
    %23 = vector.broadcast %22 : vector<1x1x1xf32> to vector<2x16x1xf32>
    %24 = arith.addf %12, %23 : vector<2x16x1xf32>
    %25 = vector.broadcast %24 : vector<2x16x1xf32> to vector<2x16x128xf32>
    %26 = vector.broadcast %17 : vector<2x1x128xf32> to vector<2x16x128xf32>
    %27 = arith.addf %25, %26 : vector<2x16x128xf32>
    %28 = arith.addf %27, %21 : vector<2x16x128xf32>
    %cst_21 = arith.constant 0.000000e+00 : f32
    %29 = vector.broadcast %cst_21 : f32 to vector<2x1x128xf32>
    %30 = arith.cmpf ogt, %7, %29 : vector<2x1x128xf32>
    %cst_22 = arith.constant -1.000000e+30 : f32
    %31 = vector.shape_cast %30 : vector<2x1x128xi1> to vector<2x1x128xi1>
    %32 = vector.broadcast %31 : vector<2x1x128xi1> to vector<2x16x128xi1>
    %33 = vector.broadcast %cst_22 : f32 to vector<2x16x128xf32>
    %34 = arith.select %32, %28, %33 : vector<2x16x128xi1>, vector<2x16x128xf32>
    %cst_23 = arith.constant dense<0xFF800000> : vector<2x16xf32>
    %35 = vector.multi_reduction <maximumf>, %34, %cst_23 [2] : vector<2x16x128xf32> to vector<2x16xf32>
    %36 = vector.shape_cast %35 : vector<2x16xf32> to vector<2x16x1xf32>
    %37 = vector.broadcast %36 : vector<2x16x1xf32> to vector<2x16x128xf32>
    %38 = arith.subf %34, %37 : vector<2x16x128xf32>
    %39 = math.exp %38 : vector<2x16x128xf32>
    %cst_24 = arith.constant dense<0.000000e+00> : vector<2x16xf32>
    %40 = vector.multi_reduction <add>, %39, %cst_24 [2] : vector<2x16x128xf32> to vector<2x16xf32>
    %41 = vector.shape_cast %40 : vector<2x16xf32> to vector<2x16x1xf32>
    %42 = tpu.reciprocal %41 {approx = true} : vector<2x16x1xf32> -> vector<2x16x1xf32>
    %43 = vector.broadcast %42 : vector<2x16x1xf32> to vector<2x16x128xf32>
    %44 = arith.mulf %39, %43 : vector<2x16x128xf32>
    %cst_25 = arith.constant 0.000000e+00 : f32
    %45 = vector.broadcast %cst_25 : f32 to vector<2x16x1xf32>
    %46 = arith.cmpf ogt, %6, %45 : vector<2x16x1xf32>
    %cst_26 = arith.constant -1.000000e+30 : f32
    %47 = vector.shape_cast %46 : vector<2x16x1xi1> to vector<2x16x1xi1>
    %48 = vector.broadcast %47 : vector<2x16x1xi1> to vector<2x16x128xi1>
    %49 = vector.broadcast %cst_26 : f32 to vector<2x16x128xf32>
    %50 = arith.select %48, %28, %49 : vector<2x16x128xi1>, vector<2x16x128xf32>
    %cst_27 = arith.constant dense<0xFF800000> : vector<2x128xf32>
    %51 = vector.multi_reduction <maximumf>, %50, %cst_27 [1] : vector<2x16x128xf32> to vector<2x128xf32>
    %52 = vector.shape_cast %51 : vector<2x128xf32> to vector<2x1x128xf32>
    %53 = vector.broadcast %52 : vector<2x1x128xf32> to vector<2x16x128xf32>
    %54 = arith.subf %50, %53 : vector<2x16x128xf32>
    %55 = math.exp %54 : vector<2x16x128xf32>
    %cst_28 = arith.constant dense<0.000000e+00> : vector<2x128xf32>
    %56 = vector.multi_reduction <add>, %55, %cst_28 [1] : vector<2x16x128xf32> to vector<2x128xf32>
    %57 = vector.shape_cast %56 : vector<2x128xf32> to vector<2x1x128xf32>
    %58 = tpu.reciprocal %57 {approx = true} : vector<2x1x128xf32> -> vector<2x1x128xf32>
    %59 = vector.broadcast %58 : vector<2x1x128xf32> to vector<2x16x128xf32>
    %60 = arith.mulf %55, %59 : vector<2x16x128xf32>
    "tpu.trace_start"() <{level = 10 : i32, message = "blm,bmd->bld"}> : () -> ()
    %cst_29 = arith.constant dense<0.000000e+00> : vector<2x16x128xf32>
    %61 = tpu.matmul %44, %1, %cst_29 {dimension_numbers = #tpu.dot_dimension_numbers<[2], [1], [1], [2], [0, 0, 0, 1, 1, 2], [0], [0]>} : vector<2x16x128xf32>, vector<2x128x128xf32>, vector<2x16x128xf32> -> vector<2x16x128xf32>
    "tpu.trace_stop"() : () -> ()
    "tpu.trace_start"() <{level = 10 : i32, message = "blm,bld->bmd"}> : () -> ()
    %cst_30 = arith.constant dense<0.000000e+00> : vector<2x128x128xf32>
    %62 = tpu.matmul %60, %0, %cst_30 {dimension_numbers = #tpu.dot_dimension_numbers<[1], [1], [2], [2], [0, 0, 0, 2, 1, 2], [0], [0]>} : vector<2x16x128xf32>, vector<2x16x128xf32>, vector<2x128x128xf32> -> vector<2x128x128xf32>
    "tpu.trace_stop"() : () -> ()
    "tpu.trace_start"() <{level = 10 : i32, message = "blm,bmd->bld"}> : () -> ()
    %cst_31 = arith.constant dense<0.000000e+00> : vector<2x16x128xf32>
    %63 = tpu.matmul %44, %62, %cst_31 {dimension_numbers = #tpu.dot_dimension_numbers<[2], [1], [1], [2], [0, 0, 0, 1, 1, 2], [0], [0]>} : vector<2x16x128xf32>, vector<2x128x128xf32>, vector<2x16x128xf32> -> vector<2x16x128xf32>
    "tpu.trace_stop"() : () -> ()
    %c0_32 = arith.constant 0 : index
    %c0_33 = arith.constant 0 : index
    %c0_34 = arith.constant 0 : index
    %64 = vector.load %arg9[%c0_32, %c0_33, %c0_34] : memref<2x16x512xf32, #tpu.memory_space<vmem>>, vector<2x16x128xf32>
    tpu.vector_store %arg9[%c0_32, %c0_33, %c0_34], %0 {strides = array<i32>} : memref<2x16x512xf32, #tpu.memory_space<vmem>>, vector<2x16x128xf32>,
    %c0_35 = arith.constant 0 : index
    %c0_36 = arith.constant 0 : index
    %c128 = arith.constant 128 : index
    %65 = vector.load %arg9[%c0_35, %c0_36, %c128] : memref<2x16x512xf32, #tpu.memory_space<vmem>>, vector<2x16x128xf32>
    tpu.vector_store %arg9[%c0_35, %c0_36, %c128], %61 {strides = array<i32>} : memref<2x16x512xf32, #tpu.memory_space<vmem>>, vector<2x16x128xf32>,
    %66 = arith.mulf %0, %61 : vector<2x16x128xf32>
    %c0_37 = arith.constant 0 : index
    %c0_38 = arith.constant 0 : index
    %c256 = arith.constant 256 : index
    %67 = vector.load %arg9[%c0_37, %c0_38, %c256] : memref<2x16x512xf32, #tpu.memory_space<vmem>>, vector<2x16x128xf32>
    tpu.vector_store %arg9[%c0_37, %c0_38, %c256], %66 {strides = array<i32>} : memref<2x16x512xf32, #tpu.memory_space<vmem>>, vector<2x16x128xf32>,
    %68 = arith.mulf %0, %63 : vector<2x16x128xf32>
    %c0_39 = arith.constant 0 : index
    %c0_40 = arith.constant 0 : index
    %c384 = arith.constant 384 : index
    %69 = vector.load %arg9[%c0_39, %c0_40, %c384] : memref<2x16x512xf32, #tpu.memory_space<vmem>>, vector<2x16x128xf32>
    tpu.vector_store %arg9[%c0_39, %c0_40, %c384], %68 {strides = array<i32>} : memref<2x16x512xf32, #tpu.memory_space<vmem>>, vector<2x16x128xf32>,
    return
  }
  func.func @transform_0(%arg0: i32) -> (i32, i32) {
    %c0_i32 = arith.constant 0 : i32
    %c0_i32_0 = arith.constant 0 : i32
    %c0_i32_1 = arith.constant 0 : i32
    return %c0_i32, %c0_i32_0 : i32, i32
  }
  func.func @transform_1(%arg0: i32) -> (i32, i32) {
    %c0_i32 = arith.constant 0 : i32
    %c0_i32_0 = arith.constant 0 : i32
    %c0_i32_1 = arith.constant 0 : i32
    return %c0_i32, %c0_i32_0 : i32, i32
  }
  func.func @transform_2(%arg0: i32) -> (i32, i32) {
    %c0_i32 = arith.constant 0 : i32
    %c0_i32_0 = arith.constant 0 : i32
    %c0_i32_1 = arith.constant 0 : i32
    return %c0_i32, %c0_i32_0 : i32, i32
  }
  func.func @transform_3(%arg0: i32) -> (i32, i32) {
    %c0_i32 = arith.constant 0 : i32
    %c0_i32_0 = arith.constant 0 : i32
    %c0_i32_1 = arith.constant 0 : i32
    return %c0_i32, %c0_i32_0 : i32, i32
  }
  func.func @transform_4(%arg0: i32) -> (i32, i32, i32) {
    %c0_i32 = arith.constant 0 : i32
    %c0_i32_0 = arith.constant 0 : i32
    %c0_i32_1 = arith.constant 0 : i32
    return %arg0, %c0_i32, %c0_i32_0 : i32, i32, i32
  }
  func.func @transform_5(%arg0: i32) -> (i32, i32, i32) {
    %c0_i32 = arith.constant 0 : i32
    %c0_i32_0 = arith.constant 0 : i32
    %c0_i32_1 = arith.constant 0 : i32
    return %arg0, %c0_i32, %c0_i32_0 : i32, i32, i32
  }
  func.func @transform_6(%arg0: i32) -> (i32, i32, i32) {
    %c0_i32 = arith.constant 0 : i32
    %c0_i32_0 = arith.constant 0 : i32
    %c0_i32_1 = arith.constant 0 : i32
    return %arg0, %c0_i32, %c0_i32_0 : i32, i32, i32
  }
  func.func @transform_7(%arg0: i32) -> (i32, i32, i32) {
    %c0_i32 = arith.constant 0 : i32
    %c0_i32_0 = arith.constant 0 : i32
    %c0_i32_1 = arith.constant 0 : i32
    return %arg0, %c0_i32, %c0_i32_0 : i32, i32, i32
  }
  func.func @transform_8(%arg0: i32) -> (i32, i32, i32) {
    %c0_i32 = arith.constant 0 : i32
    %c0_i32_0 = arith.constant 0 : i32
    %c0_i32_1 = arith.constant 0 : i32
    return %arg0, %c0_i32, %c0_i32_0 : i32, i32, i32
  }
}

</mosaic_0001>

<llo_original>
// kernel: tpu_custom_call.1
$region0: #{tpu_custom_call.1}
  #allocation0 [shape = 'u32[]', space=smem, size = 0x4, offset = 0x4, fixed_abs, tag = 'smem constant byte address 0x4 - core index']
  #allocation1 [shape = 'u32[144,128]{1,0:T(1,128)}', space=vmem, size = 0x12000, scoped, tag = 'internal scratch']
  #allocation2 [shape = 'f32[1,1]{1,0:T(1,128)S(1)}', space=vmem, size = 0x200, scoped, tag = 'scoped memory for tpu_custom_call.1']
  %s0 = inlined_call_operand.vmem [shape: f32[1,128], index: 0, kind: input, shape index: {}]
  %s1 = inlined_call_operand.vmem [shape: f32[1,128], index: 1, kind: input, shape index: {}]
  %s2 = inlined_call_operand.vmem [shape: f32[1,128], index: 2, kind: input, shape index: {}]
  %s3 = inlined_call_operand.<no memory space> [shape: f32[1,1], index: 3, kind: input, shape index: {}]
  %s4 = inlined_call_operand.vmem [shape: f32[2,16,128], index: 4, kind: input, shape index: {}]
  %s5 = inlined_call_operand.hbm [shape: f32[2,128,128], index: 5, kind: input, shape index: {}]
  %s6 = inlined_call_operand.vmem [shape: f32[2,16,1], index: 6, kind: input, shape index: {}]
  %s7 = inlined_call_operand.vmem [shape: f32[2,1,128], index: 7, kind: input, shape index: {}]
  %s8 = inlined_call_operand.hbm [shape: f32[2,16,512], index: 8, kind: output, shape index: {}]
  %s9 = sld [smem:[#allocation0]]
  $region46: #{tpu_custom_call.1} parent=0
    _
  %s11 = ssub.s32 1, %s9
  %s12 = scalar_select 0, %s11, %s9
  %v13 = vstv %s3
  %14 = vst [vmem:[#allocation2] sm:$0x1] %v13
  $region1: #{tpu_custom_call.1} parent=0
    #allocation3 [shape = 'u8[131072]{0}', space=vmem, size = 0x20000, scoped, tag = 'input window, operand 5, single buffered']
    #allocation4 [shape = 's32[1]{0}', space=sflag, size = 0x4, scoped, tag = 'scoped memory for tpu_custom_call.1']
    #allocation5 [shape = 's32[1]{0}', space=sflag, size = 0x4, scoped, tag = 'scoped memory for tpu_custom_call.1']
    #allocation6 [shape = 'u8[65536]{0}', space=vmem, size = 0x10000, scoped, tag = 'output window, operand 0, single buffered']
    %15 = vsyncpa [#allocation4], 0
    %16 = vsyncpa [#allocation5], 0
    // Predicated region
    $region2: #{tpu_custom_call.1} parent=1 // pred_check
      _
    $region3: #{tpu_custom_call.1} parent=1 // pred_check_branch
      %18 = sbr.rel (0) target = $region5
    $region4: #{tpu_custom_call.1} parent=1 // pred_region
      _
    $region5: #{tpu_custom_call.1} parent=1 // pred_fallthru
      _
    // Predicated region
    $region6: #{tpu_custom_call.1} parent=1 // pred_check
      _
    $region7: #{tpu_custom_call.1} parent=1 // pred_check_branch
      %20 = sbr.rel (0) target = $region9
    $region8: #{tpu_custom_call.1} parent=1 // pred_region
      _
    $region9: #{tpu_custom_call.1} parent=1 // pred_fallthru
      _
    // Predicated region
    $region10: #{tpu_custom_call.1} parent=1 // pred_check
      _
    $region11: #{tpu_custom_call.1} parent=1 // pred_check_branch
      %22 = sbr.rel (0) target = $region13
    $region12: #{tpu_custom_call.1} parent=1 // pred_region
      _
    $region13: #{tpu_custom_call.1} parent=1 // pred_fallthru
      _
    // Predicated region
    $region14: #{tpu_custom_call.1} parent=1 // pred_check
      _
    $region15: #{tpu_custom_call.1} parent=1 // pred_check_branch
      %24 = sbr.rel (0) target = $region17
    $region16: #{tpu_custom_call.1} parent=1 // pred_region
      _
    $region17: #{tpu_custom_call.1} parent=1 // pred_fallthru
      _
    // Predicated region
    $region18: #{tpu_custom_call.1} parent=1 // pred_check
      _
    $region19: #{tpu_custom_call.1} parent=1 // pred_check_branch
      %26 = sbr.rel (0) target = $region21
    $region20: #{tpu_custom_call.1} parent=1 // pred_region
      _
    $region21: #{tpu_custom_call.1} parent=1 // pred_fallthru
      _
    // Predicated region
    $region22: #{tpu_custom_call.1} parent=1 // pred_check
      _
    $region23: #{tpu_custom_call.1} parent=1 // pred_check_branch
      %28 = sbr.rel (0) target = $region25
    $region24: #{tpu_custom_call.1} parent=1 // pred_region
      %s30 = ssub.s32 4096, 4096
      %31 = vsyncadd [#allocation4], %s30
      %s32 = sshll.u32 [#allocation3], 4
      %s33 = int_to_ptr.vmem [resolvable:$true] %s32
      %38 = dma.hbm_to_vmem [thread:$0]  %s5, 4096, %s33, [#allocation4], 128, 128, 8
    $region25: #{tpu_custom_call.1} parent=1 // pred_fallthru
      _
    // Predicated region
    $region26: #{tpu_custom_call.1} parent=1 // pred_check
      _
    $region27: #{tpu_custom_call.1} parent=1 // pred_check_branch
      %40 = sbr.rel (0) target = $region29
    $region28: #{tpu_custom_call.1} parent=1 // pred_region
      _
    $region29: #{tpu_custom_call.1} parent=1 // pred_fallthru
      _
    // Predicated region
    $region30: #{tpu_custom_call.1} parent=1 // pred_check
      _
    $region31: #{tpu_custom_call.1} parent=1 // pred_check_branch
      %42 = sbr.rel (0) target = $region33
    $region32: #{tpu_custom_call.1} parent=1 // pred_region
      _
    $region33: #{tpu_custom_call.1} parent=1 // pred_fallthru
      _
    // Predicated region
    $region34: #{tpu_custom_call.1} parent=1 // pred_check
      _
    $region35: #{tpu_custom_call.1} parent=1 // pred_check_branch
      %44 = sbr.rel (0) target = $region37
    $region36: #{tpu_custom_call.1} parent=1 // pred_region
      %45 = dma.done [#allocation4], 4096
    $region37: #{tpu_custom_call.1} parent=1 // pred_fallthru
      _
    %v46 = vld [vmem:[%s4] sm:$0xff]
    %v47 = vld [vmem:[%s4 + $0x8] sm:$0xff]
    %v48 = vld [vmem:[%s4 + $0x10] sm:$0xff]
    %v49 = vld [vmem:[%s4 + $0x18] sm:$0xff]
    %v50 = vld [vmem:[#allocation3] sm:$0xff]
    %v51 = vld [vmem:[#allocation3 + $0x8] sm:$0xff]
    %v52 = vld [vmem:[#allocation3 + $0x10] sm:$0xff]
    %v53 = vld [vmem:[#allocation3 + $0x18] sm:$0xff]
    %v54 = vld [vmem:[#allocation3 + $0x20] sm:$0xff]
    %v55 = vld [vmem:[#allocation3 + $0x28] sm:$0xff]
    %v56 = vld [vmem:[#allocation3 + $0x30] sm:$0xff]
    %v57 = vld [vmem:[#allocation3 + $0x38] sm:$0xff]
    %v58 = vld [vmem:[#allocation3 + $0x40] sm:$0xff]
    %v59 = vld [vmem:[#allocation3 + $0x48] sm:$0xff]
    %v60 = vld [vmem:[#allocation3 + $0x50] sm:$0xff]
    %v61 = vld [vmem:[#allocation3 + $0x58] sm:$0xff]
    %v62 = vld [vmem:[#allocation3 + $0x60] sm:$0xff]
    %v63 = vld [vmem:[#allocation3 + $0x68] sm:$0xff]
    %v64 = vld [vmem:[#allocation3 + $0x70] sm:$0xff]
    %v65 = vld [vmem:[#allocation3 + $0x78] sm:$0xff]
    %v66 = vld [vmem:[#allocation3 + $0x80] sm:$0xff]
    %v67 = vld [vmem:[#allocation3 + $0x88] sm:$0xff]
    %v68 = vld [vmem:[#allocation3 + $0x90] sm:$0xff]
    %v69 = vld [vmem:[#allocation3 + $0x98] sm:$0xff]
    %v70 = vld [vmem:[#allocation3 + $0xa0] sm:$0xff]
    %v71 = vld [vmem:[#allocation3 + $0xa8] sm:$0xff]
    %v72 = vld [vmem:[#allocation3 + $0xb0] sm:$0xff]
    %v73 = vld [vmem:[#allocation3 + $0xb8] sm:$0xff]
    %v74 = vld [vmem:[#allocation3 + $0xc0] sm:$0xff]
    %v75 = vld [vmem:[#allocation3 + $0xc8] sm:$0xff]
    %v76 = vld [vmem:[#allocation3 + $0xd0] sm:$0xff]
    %v77 = vld [vmem:[#allocation3 + $0xd8] sm:$0xff]
    %v78 = vld [vmem:[#allocation3 + $0xe0] sm:$0xff]
    %v79 = vld [vmem:[#allocation3 + $0xe8] sm:$0xff]
    %v80 = vld [vmem:[#allocation3 + $0xf0] sm:$0xff]
    %v81 = vld [vmem:[#allocation3 + $0xf8] sm:$0xff]
    %v82 = vld [vmem:[%s0] sm:$0x1]
    %v83 = vld [vmem:[%s1] sm:$0x1]
    %v84 = vld [vmem:[%s2] sm:$0x1]
    %v85 = vld [vmem:[#allocation2] sm:$0x1]
    %v86 = vld [vmem:[%s6] sm:$0xff]
    %v87 = vld [vmem:[%s6 + $0x8] sm:$0xff]
    %v88 = vld [vmem:[%s6 + $0x10] sm:$0xff]
    %v89 = vld [vmem:[%s6 + $0x18] sm:$0xff]
    %v90 = vld [vmem:[%s7] sm:$0x1]
    %v91 = vld [vmem:[%s7 + $0x1] sm:$0x1]
    %v93 = vlaneseq
    %v94 = vshrl.u32 %v93, 7
    %v95 = vsub.s32 0, %v94
    %v96 = vrot.slane %v82, %v95
    %v98 = vmul.f32 %v46, %v96
    %v99 = vmul.f32 %v47, %v96
    %v100 = vmul.f32 %v48, %v96
    %v101 = vmul.f32 %v49, %v96
    %102 = vadd.xlane.f32.xlu0 %v98
    %v103 = vpop.xlane.xlu0 %102
    %104 = vadd.xlane.f32.xlu0 %v99
    %v105 = vpop.xlane.xlu0 %104
    %106 = vadd.xlane.f32.xlu0 %v100
    %v107 = vpop.xlane.xlu0 %106
    %108 = vadd.xlane.f32.xlu0 %v101
    %v109 = vpop.xlane.xlu0 %108
    %v111 = vlaneseq
    %v112 = vshrl.u32 %v111, 7
    %v113 = vsub.s32 0, %v112
    %v114 = vrot.slane %v83, %v113
    %v116 = vmul.f32 %v50, %v114
    %v117 = vmul.f32 %v51, %v114
    %v118 = vmul.f32 %v52, %v114
    %v119 = vmul.f32 %v53, %v114
    %v120 = vmul.f32 %v54, %v114
    %v121 = vmul.f32 %v55, %v114
    %v122 = vmul.f32 %v56, %v114
    %v123 = vmul.f32 %v57, %v114
    %v124 = vmul.f32 %v58, %v114
    %v125 = vmul.f32 %v59, %v114
    %v126 = vmul.f32 %v60, %v114
    %v127 = vmul.f32 %v61, %v114
    %v128 = vmul.f32 %v62, %v114
    %v129 = vmul.f32 %v63, %v114
    %v130 = vmul.f32 %v64, %v114
    %v131 = vmul.f32 %v65, %v114
    %v132 = vmul.f32 %v66, %v114
    %v133 = vmul.f32 %v67, %v114
    %v134 = vmul.f32 %v68, %v114
    %v135 = vmul.f32 %v69, %v114
    %v136 = vmul.f32 %v70, %v114
    %v137 = vmul.f32 %v71, %v114
    %v138 = vmul.f32 %v72, %v114
    %v139 = vmul.f32 %v73, %v114
    %v140 = vmul.f32 %v74, %v114
    %v141 = vmul.f32 %v75, %v114
    %v142 = vmul.f32 %v76, %v114
    %v143 = vmul.f32 %v77, %v114
    %v144 = vmul.f32 %v78, %v114
    %v145 = vmul.f32 %v79, %v114
    %v146 = vmul.f32 %v80, %v114
    %v147 = vmul.f32 %v81, %v114
    %148 = vadd.xlane.f32.xlu0 %v116
    %v149 = vpop.xlane.xlu0 %148
    %150 = vadd.xlane.f32.xlu0 %v117
    %v151 = vpop.xlane.xlu0 %150
    %152 = vadd.xlane.f32.xlu0 %v118
    %v153 = vpop.xlane.xlu0 %152
    %154 = vadd.xlane.f32.xlu0 %v119
    %v155 = vpop.xlane.xlu0 %154
    %156 = vadd.xlane.f32.xlu0 %v120
    %v157 = vpop.xlane.xlu0 %156
    %158 = vadd.xlane.f32.xlu0 %v121
    %v159 = vpop.xlane.xlu0 %158
    %160 = vadd.xlane.f32.xlu0 %v122
    %v161 = vpop.xlane.xlu0 %160
    %162 = vadd.xlane.f32.xlu0 %v123
    %v163 = vpop.xlane.xlu0 %162
    %164 = vadd.xlane.f32.xlu0 %v124
    %v165 = vpop.xlane.xlu0 %164
    %166 = vadd.xlane.f32.xlu0 %v125
    %v167 = vpop.xlane.xlu0 %166
    %168 = vadd.xlane.f32.xlu0 %v126
    %v169 = vpop.xlane.xlu0 %168
    %170 = vadd.xlane.f32.xlu0 %v127
    %v171 = vpop.xlane.xlu0 %170
    %172 = vadd.xlane.f32.xlu0 %v128
    %v173 = vpop.xlane.xlu0 %172
    %174 = vadd.xlane.f32.xlu0 %v129
    %v175 = vpop.xlane.xlu0 %174
    %176 = vadd.xlane.f32.xlu0 %v130
    %v177 = vpop.xlane.xlu0 %176
    %178 = vadd.xlane.f32.xlu0 %v131
    %v179 = vpop.xlane.xlu0 %178
    %180 = vadd.xlane.f32.xlu0 %v132
    %v181 = vpop.xlane.xlu0 %180
    %182 = vadd.xlane.f32.xlu0 %v133
    %v183 = vpop.xlane.xlu0 %182
    %184 = vadd.xlane.f32.xlu0 %v134
    %v185 = vpop.xlane.xlu0 %184
    %186 = vadd.xlane.f32.xlu0 %v135
    %v187 = vpop.xlane.xlu0 %186
    %188 = vadd.xlane.f32.xlu0 %v136
    %v189 = vpop.xlane.xlu0 %188
    %190 = vadd.xlane.f32.xlu0 %v137
    %v191 = vpop.xlane.xlu0 %190
    %192 = vadd.xlane.f32.xlu0 %v138
    %v193 = vpop.xlane.xlu0 %192
    %194 = vadd.xlane.f32.xlu0 %v139
    %v195 = vpop.xlane.xlu0 %194
    %196 = vadd.xlane.f32.xlu0 %v140
    %v197 = vpop.xlane.xlu0 %196
    %198 = vadd.xlane.f32.xlu0 %v141
    %v199 = vpop.xlane.xlu0 %198
    %200 = vadd.xlane.f32.xlu0 %v142
    %v201 = vpop.xlane.xlu0 %200
    %202 = vadd.xlane.f32.xlu0 %v143
    %v203 = vpop.xlane.xlu0 %202
    %204 = vadd.xlane.f32.xlu0 %v144
    %v205 = vpop.xlane.xlu0 %204
    %206 = vadd.xlane.f32.xlu0 %v145
    %v207 = vpop.xlane.xlu0 %206
    %208 = vadd.xlane.f32.xlu0 %v146
    %v209 = vpop.xlane.xlu0 %208
    %210 = vadd.xlane.f32.xlu0 %v147
    %v211 = vpop.xlane.xlu0 %210
    %v213 = vlaneseq
    %v214 = vshrl.u32 %v213, 7
    %v215 = vsub.s32 0, %v214
    %v216 = vrot.slane %v84, %v215
    %v218 = vmul.f32 %v46, %v216
    %v219 = vmul.f32 %v47, %v216
    %v220 = vmul.f32 %v48, %v216
    %v221 = vmul.f32 %v49, %v216
    %222 = vmatprep.subr.mxu0 0.0
    %223 = vmatpush1.xpose.msra.mxu0 %v65
    %224 = vmatprep.subr.mxu0 0.0
    %225 = vmatpush1.xpose.msra.mxu0 %v64
    %226 = vmatprep.subr.mxu0 0.0
    %227 = vmatpush1.xpose.msra.mxu0 %v63
    %228 = vmatprep.subr.mxu0 0.0
    %229 = vmatpush1.xpose.msra.mxu0 %v62
    %230 = vmatprep.subr.mxu0 0.0
    %231 = vmatpush1.xpose.msra.mxu0 %v61
    %232 = vmatprep.subr.mxu0 0.0
    %233 = vmatpush1.xpose.msra.mxu0 %v60
    %234 = vmatprep.subr.mxu0 0.0
    %235 = vmatpush1.xpose.msra.mxu0 %v59
    %236 = vmatprep.subr.mxu0 0.0
    %237 = vmatpush1.xpose.msra.mxu0 %v58
    %238 = vmatprep.subr.mxu0 0.0
    %239 = vmatpush1.xpose.msra.mxu0 %v57
    %240 = vmatprep.subr.mxu0 0.0
    %241 = vmatpush1.xpose.msra.mxu0 %v56
    %242 = vmatprep.subr.mxu0 0.0
    %243 = vmatpush1.xpose.msra.mxu0 %v55
    %244 = vmatprep.subr.mxu0 0.0
    %245 = vmatpush1.xpose.msra.mxu0 %v54
    %246 = vmatprep.subr.mxu0 0.0
    %247 = vmatpush1.xpose.msra.mxu0 %v53
    %248 = vmatprep.subr.mxu0 0.0
    %249 = vmatpush1.xpose.msra.mxu0 %v52
    %250 = vmatprep.subr.mxu0 0.0
    %251 = vmatpush1.xpose.msra.mxu0 %v51
    %252 = vmatprep.subr.mxu0 0.0
    %253 = vmatpush1.xpose.msra.mxu0 %v50
    %254 = vmatprep.subr.mxu0 0.0
    %255 = vmatpush2.xpose.msra.mxu0 0.0
    %256 = vmatprep.subr.mxu0 0.0
    %257 = vmatpush2.xpose.msra.mxu0 0.0
    %258 = vmatprep.subr.mxu0 0.0
    %259 = vmatpush2.xpose.msra.mxu0 0.0
    %260 = vmatprep.subr.mxu0 0.0
    %261 = vmatpush2.xpose.msra.mxu0 0.0
    %262 = vmatprep.subr.mxu0 0.0
    %263 = vmatpush2.xpose.msra.mxu0 0.0
    %264 = vmatprep.subr.mxu0 0.0
    %265 = vmatpush2.xpose.msra.mxu0 0.0
    %266 = vmatprep.subr.mxu0 0.0
    %267 = vmatpush2.xpose.msra.mxu0 0.0
    %268 = vmatprep.subr.mxu0 0.0
    %269 = vmatpush2.xpose.msra.mxu0 0.0
    %270 = vmatprep.subr.mxu0 0.0
    %271 = vmatpush2.xpose.msra.mxu0 0.0
    %272 = vmatprep.subr.mxu0 0.0
    %273 = vmatpush2.xpose.msra.mxu0 0.0
    %274 = vmatprep.subr.mxu0 0.0
    %275 = vmatpush2.xpose.msra.mxu0 0.0
    %276 = vmatprep.subr.mxu0 0.0
    %277 = vmatpush2.xpose.msra.mxu0 0.0
    %278 = vmatprep.subr.mxu0 0.0
    %279 = vmatpush2.xpose.msra.mxu0 0.0
    %280 = vmatprep.subr.mxu0 0.0
    %281 = vmatpush2.xpose.msra.mxu0 0.0
    %282 = vmatprep.subr.mxu0 0.0
    %283 = vmatpush2.xpose.msra.mxu0 0.0
    %284 = vmatprep.subr.mxu0 0.0
    %285 = vmatpush2.xpose.msra.mxu0 0.0
    %286 = vmatprep.mubr.f32.mxu0 0.0
    %287 = vmatmul.mubr.f32.gmra.mxu0 %v218
    %v288 = vpop.f32.mrf.mxu0
    %v289 = vadd.f32 0.0, %v288
    %v290 = vpop.f32.mrf.mxu0
    %291 = vmatprep.mubr.f32.mxu0 0.0
    %292 = vmatmul.mubr.f32.gmra.mxu0 %v219
    %v293 = vpop.f32.mrf.mxu0
    %v294 = vadd.f32 0.0, %v293
    %v295 = vpop.f32.mrf.mxu0
    %296 = vdwg.mxu0
    %297 = vmatprep.subr.mxu0 0.0
    %298 = vmatpush1.xpose.msra.mxu0 %v81
    %299 = vmatprep.subr.mxu0 0.0
    %300 = vmatpush1.xpose.msra.mxu0 %v80
    %301 = vmatprep.subr.mxu0 0.0
    %302 = vmatpush1.xpose.msra.mxu0 %v79
    %303 = vmatprep.subr.mxu0 0.0
    %304 = vmatpush1.xpose.msra.mxu0 %v78
    %305 = vmatprep.subr.mxu0 0.0
    %306 = vmatpush1.xpose.msra.mxu0 %v77
    %307 = vmatprep.subr.mxu0 0.0
    %308 = vmatpush1.xpose.msra.mxu0 %v76
    %309 = vmatprep.subr.mxu0 0.0
    %310 = vmatpush1.xpose.msra.mxu0 %v75
    %311 = vmatprep.subr.mxu0 0.0
    %312 = vmatpush1.xpose.msra.mxu0 %v74
    %313 = vmatprep.subr.mxu0 0.0
    %314 = vmatpush1.xpose.msra.mxu0 %v73
    %315 = vmatprep.subr.mxu0 0.0
    %316 = vmatpush1.xpose.msra.mxu0 %v72
    %317 = vmatprep.subr.mxu0 0.0
    %318 = vmatpush1.xpose.msra.mxu0 %v71
    %319 = vmatprep.subr.mxu0 0.0
    %320 = vmatpush1.xpose.msra.mxu0 %v70
    %321 = vmatprep.subr.mxu0 0.0
    %322 = vmatpush1.xpose.msra.mxu0 %v69
    %323 = vmatprep.subr.mxu0 0.0
    %324 = vmatpush1.xpose.msra.mxu0 %v68
    %325 = vmatprep.subr.mxu0 0.0
    %326 = vmatpush1.xpose.msra.mxu0 %v67
    %327 = vmatprep.subr.mxu0 0.0
    %328 = vmatpush1.xpose.msra.mxu0 %v66
    %329 = vmatprep.subr.mxu0 0.0
    %330 = vmatpush2.xpose.msra.mxu0 0.0
    %331 = vmatprep.subr.mxu0 0.0
    %332 = vmatpush2.xpose.msra.mxu0 0.0
    %333 = vmatprep.subr.mxu0 0.0
    %334 = vmatpush2.xpose.msra.mxu0 0.0
    %335 = vmatprep.subr.mxu0 0.0
    %336 = vmatpush2.xpose.msra.mxu0 0.0
    %337 = vmatprep.subr.mxu0 0.0
    %338 = vmatpush2.xpose.msra.mxu0 0.0
    %339 = vmatprep.subr.mxu0 0.0
    %340 = vmatpush2.xpose.msra.mxu0 0.0
    %341 = vmatprep.subr.mxu0 0.0
    %342 = vmatpush2.xpose.msra.mxu0 0.0
    %343 = vmatprep.subr.mxu0 0.0
    %344 = vmatpush2.xpose.msra.mxu0 0.0
    %345 = vmatprep.subr.mxu0 0.0
    %346 = vmatpush2.xpose.msra.mxu0 0.0
    %347 = vmatprep.subr.mxu0 0.0
    %348 = vmatpush2.xpose.msra.mxu0 0.0
    %349 = vmatprep.subr.mxu0 0.0
    %350 = vmatpush2.xpose.msra.mxu0 0.0
    %351 = vmatprep.subr.mxu0 0.0
    %352 = vmatpush2.xpose.msra.mxu0 0.0
    %353 = vmatprep.subr.mxu0 0.0
    %354 = vmatpush2.xpose.msra.mxu0 0.0
    %355 = vmatprep.subr.mxu0 0.0
    %356 = vmatpush2.xpose.msra.mxu0 0.0
    %357 = vmatprep.subr.mxu0 0.0
    %358 = vmatpush2.xpose.msra.mxu0 0.0
    %359 = vmatprep.subr.mxu0 0.0
    %360 = vmatpush2.xpose.msra.mxu0 0.0
    %361 = vmatprep.mubr.f32.mxu0 0.0
    %362 = vmatmul.mubr.f32.gmra.mxu0 %v220
    %v363 = vpop.f32.mrf.mxu0
    %v364 = vadd.f32 0.0, %v363
    %v365 = vpop.f32.mrf.mxu0
    %366 = vmatprep.mubr.f32.mxu0 0.0
    %367 = vmatmul.mubr.f32.gmra.mxu0 %v221
    %v368 = vpop.f32.mrf.mxu0
    %v369 = vadd.f32 0.0, %v368
    %v370 = vpop.f32.mrf.mxu0
    %371 = vdwg.mxu0
    %v373 = vlaneseq
    %v374 = vshrl.u32 %v373, 7
    %v375 = vsub.s32 0, %v374
    %v376 = vrot.slane %v85, %v375
    %v378 = vadd.f32 %v103, %v376
    %v379 = vadd.f32 %v105, %v376
    %v380 = vadd.f32 %v107, %v376
    %v381 = vadd.f32 %v109, %v376
    %383 = vset.pattern.permute.xlu0 0
    %384 = vperm.xlu0 %383, %v378
    %v385 = vpop.permute.xlu0 %384
    %388 = vset.pattern.permute.xlu0 0
    %389 = vperm.xlu0 %388, %v379
    %v390 = vpop.permute.xlu0 %389
    %393 = vset.pattern.permute.xlu0 0
    %394 = vperm.xlu0 %393, %v380
    %v395 = vpop.permute.xlu0 %394
    %398 = vset.pattern.permute.xlu0 0
    %399 = vperm.xlu0 %398, %v381
    %v400 = vpop.permute.xlu0 %399
    %v434 = vlaneseq
    %v435 = vand.u32 %v434, 127
    %v436 = vlaneseq
    %v437 = vshrl.u32 %v436, 7
    %v438 = vsub.s32 %v435, %v437
    %v439 = vrot.slane %v149, %v438
    %v440 = vadd.s32 %v435, 4294967288
    %v441 = vlaneseq
    %v442 = vshrl.u32 %v441, 7
    %v443 = vsub.s32 %v440, %v442
    %v444 = vrot.slane %v151, %v443
    %vm445 = vcmask 130112
    %v446 = vsel %vm445, %v444, %v439
    %v447 = vadd.s32 %v435, 4294967280
    %v448 = vlaneseq
    %v449 = vshrl.u32 %v448, 7
    %v450 = vsub.s32 %v447, %v449
    %v451 = vrot.slane %v153, %v450
    %vm452 = vcmask 195712
    %v453 = vsel %vm452, %v451, %v446
    %v454 = vadd.s32 %v435, 4294967272
    %v455 = vlaneseq
    %v456 = vshrl.u32 %v455, 7
    %v457 = vsub.s32 %v454, %v456
    %v458 = vrot.slane %v155, %v457
    %vm459 = vcmask 261312
    %v460 = vsel %vm459, %v458, %v453
    %v461 = vadd.s32 %v435, 4294967264
    %v462 = vlaneseq
    %v463 = vshrl.u32 %v462, 7
    %v464 = vsub.s32 %v461, %v463
    %v465 = vrot.slane %v157, %v464
    %vm466 = vcmask 326912
    %v467 = vsel %vm466, %v465, %v460
    %v468 = vadd.s32 %v435, 4294967256
    %v469 = vlaneseq
    %v470 = vshrl.u32 %v469, 7
    %v471 = vsub.s32 %v468, %v470
    %v472 = vrot.slane %v159, %v471
    %vm473 = vcmask 392512
    %v474 = vsel %vm473, %v472, %v467
    %v475 = vadd.s32 %v435, 4294967248
    %v476 = vlaneseq
    %v477 = vshrl.u32 %v476, 7
    %v478 = vsub.s32 %v475, %v477
    %v479 = vrot.slane %v161, %v478
    %vm480 = vcmask 458112
    %v481 = vsel %vm480, %v479, %v474
    %v482 = vadd.s32 %v435, 4294967240
    %v483 = vlaneseq
    %v484 = vshrl.u32 %v483, 7
    %v485 = vsub.s32 %v482, %v484
    %v486 = vrot.slane %v163, %v485
    %vm487 = vcmask 523712
    %v488 = vsel %vm487, %v486, %v481
    %v489 = vadd.s32 %v435, 4294967232
    %v490 = vlaneseq
    %v491 = vshrl.u32 %v490, 7
    %v492 = vsub.s32 %v489, %v491
    %v493 = vrot.slane %v165, %v492
    %vm494 = vcmask 589312
    %v495 = vsel %vm494, %v493, %v488
    %v496 = vadd.s32 %v435, 4294967224
    %v497 = vlaneseq
    %v498 = vshrl.u32 %v497, 7
    %v499 = vsub.s32 %v496, %v498
    %v500 = vrot.slane %v167, %v499
    %vm501 = vcmask 654912
    %v502 = vsel %vm501, %v500, %v495
    %v503 = vadd.s32 %v435, 4294967216
    %v504 = vlaneseq
    %v505 = vshrl.u32 %v504, 7
    %v506 = vsub.s32 %v503, %v505
    %v507 = vrot.slane %v169, %v506
    %vm508 = vcmask 720512
    %v509 = vsel %vm508, %v507, %v502
    %v510 = vadd.s32 %v435, 4294967208
    %v511 = vlaneseq
    %v512 = vshrl.u32 %v511, 7
    %v513 = vsub.s32 %v510, %v512
    %v514 = vrot.slane %v171, %v513
    %vm515 = vcmask 786112
    %v516 = vsel %vm515, %v514, %v509
    %v517 = vadd.s32 %v435, 4294967200
    %v518 = vlaneseq
    %v519 = vshrl.u32 %v518, 7
    %v520 = vsub.s32 %v517, %v519
    %v521 = vrot.slane %v173, %v520
    %vm522 = vcmask 851712
    %v523 = vsel %vm522, %v521, %v516
    %v524 = vadd.s32 %v435, 4294967192
    %v525 = vlaneseq
    %v526 = vshrl.u32 %v525, 7
    %v527 = vsub.s32 %v524, %v526
    %v528 = vrot.slane %v175, %v527
    %vm529 = vcmask 917312
    %v530 = vsel %vm529, %v528, %v523
    %v531 = vadd.s32 %v435, 4294967184
    %v532 = vlaneseq
    %v533 = vshrl.u32 %v532, 7
    %v534 = vsub.s32 %v531, %v533
    %v535 = vrot.slane %v177, %v534
    %vm536 = vcmask 982912
    %v537 = vsel %vm536, %v535, %v530
    %v538 = vadd.s32 %v435, 4294967176
    %v539 = vlaneseq
    %v540 = vshrl.u32 %v539, 7
    %v541 = vsub.s32 %v538, %v540
    %v542 = vrot.slane %v179, %v541
    %vm543 = vcmask 1048512
    %v544 = vsel %vm543, %v542, %v537
    %v545 = vlaneseq
    %v546 = vshrl.u32 %v545, 7
    %v547 = vsub.s32 %v435, %v546
    %v548 = vrot.slane %v181, %v547
    %v549 = vlaneseq
    %v550 = vshrl.u32 %v549, 7
    %v551 = vsub.s32 %v440, %v550
    %v552 = vrot.slane %v183, %v551
    %v553 = vsel %vm445, %v552, %v548
    %v554 = vlaneseq
    %v555 = vshrl.u32 %v554, 7
    %v556 = vsub.s32 %v447, %v555
    %v557 = vrot.slane %v185, %v556
    %v558 = vsel %vm452, %v557, %v553
    %v559 = vlaneseq
    %v560 = vshrl.u32 %v559, 7
    %v561 = vsub.s32 %v454, %v560
    %v562 = vrot.slane %v187, %v561
    %v563 = vsel %vm459, %v562, %v558
    %v564 = vlaneseq
    %v565 = vshrl.u32 %v564, 7
    %v566 = vsub.s32 %v461, %v565
    %v567 = vrot.slane %v189, %v566
    %v568 = vsel %vm466, %v567, %v563
    %v569 = vlaneseq
    %v570 = vshrl.u32 %v569, 7
    %v571 = vsub.s32 %v468, %v570
    %v572 = vrot.slane %v191, %v571
    %v573 = vsel %vm473, %v572, %v568
    %v574 = vlaneseq
    %v575 = vshrl.u32 %v574, 7
    %v576 = vsub.s32 %v475, %v575
    %v577 = vrot.slane %v193, %v576
    %v578 = vsel %vm480, %v577, %v573
    %v579 = vlaneseq
    %v580 = vshrl.u32 %v579, 7
    %v581 = vsub.s32 %v482, %v580
    %v582 = vrot.slane %v195, %v581
    %v583 = vsel %vm487, %v582, %v578
    %v584 = vlaneseq
    %v585 = vshrl.u32 %v584, 7
    %v586 = vsub.s32 %v489, %v585
    %v587 = vrot.slane %v197, %v586
    %v588 = vsel %vm494, %v587, %v583
    %v589 = vlaneseq
    %v590 = vshrl.u32 %v589, 7
    %v591 = vsub.s32 %v496, %v590
    %v592 = vrot.slane %v199, %v591
    %v593 = vsel %vm501, %v592, %v588
    %v594 = vlaneseq
    %v595 = vshrl.u32 %v594, 7
    %v596 = vsub.s32 %v503, %v595
    %v597 = vrot.slane %v201, %v596
    %v598 = vsel %vm508, %v597, %v593
    %v599 = vlaneseq
    %v600 = vshrl.u32 %v599, 7
    %v601 = vsub.s32 %v510, %v600
    %v602 = vrot.slane %v203, %v601
    %v603 = vsel %vm515, %v602, %v598
    %v604 = vlaneseq
    %v605 = vshrl.u32 %v604, 7
    %v606 = vsub.s32 %v517, %v605
    %v607 = vrot.slane %v205, %v606
    %v608 = vsel %vm522, %v607, %v603
    %v609 = vlaneseq
    %v610 = vshrl.u32 %v609, 7
    %v611 = vsub.s32 %v524, %v610
    %v612 = vrot.slane %v207, %v611
    %v613 = vsel %vm529, %v612, %v608
    %v614 = vlaneseq
    %v615 = vshrl.u32 %v614, 7
    %v616 = vsub.s32 %v531, %v615
    %v617 = vrot.slane %v209, %v616
    %v618 = vsel %vm536, %v617, %v613
    %v619 = vlaneseq
    %v620 = vshrl.u32 %v619, 7
    %v621 = vsub.s32 %v538, %v620
    %v622 = vrot.slane %v211, %v621
    %v623 = vsel %vm543, %v622, %v618
    %vm624 = vcmask 1042434
    %v625 = vsel %vm624, %v544, %v544
    %vm626 = vcmask 1043459
    %v627 = vsel %vm626, %v544, %v625
    %vm628 = vcmask 1044484
    %v629 = vsel %vm628, %v544, %v627
    %vm630 = vcmask 1045509
    %v631 = vsel %vm630, %v544, %v629
    %vm632 = vcmask 1046534
    %v633 = vsel %vm632, %v544, %v631
    %vm634 = vcmask 1047559
    %v635 = vsel %vm634, %v544, %v633
    %v636 = vsel %vm624, %v623, %v623
    %v637 = vsel %vm626, %v623, %v636
    %v638 = vsel %vm628, %v623, %v637
    %v639 = vsel %vm630, %v623, %v638
    %v640 = vsel %vm632, %v623, %v639
    %v641 = vsel %vm634, %v623, %v640
    %v644 = vadd.f32 %v385, %v635
    %v645 = vadd.f32 %v390, %v635
    %v646 = vadd.f32 %v395, %v641
    %v647 = vadd.f32 %v400, %v641
    %v648 = vadd.f32 %v644, %v289
    %v649 = vadd.f32 %v645, %v294
    %v650 = vadd.f32 %v646, %v364
    %v651 = vadd.f32 %v647, %v369
    %vm652 = vcmp.gt.f32.partialorder %v90, 0.0
    %vm653 = vcmp.gt.f32.partialorder %v91, 0.0
    %v654 = vsel %vm652, 1, 0
    %v655 = vsel %vm653, 1, 0
    %v656 = vlaneseq
    %v657 = vshrl.u32 %v656, 7
    %v658 = vsub.s32 0, %v657
    %v659 = vrot.slane %v654, %v658
    %v660 = vlaneseq
    %v661 = vshrl.u32 %v660, 7
    %v662 = vsub.s32 0, %v661
    %v663 = vrot.slane %v655, %v662
    %vm664 = vcmp.eq.s32.totalorder %v659, 1
    %vm665 = vcmp.eq.s32.totalorder %v663, 1
    %v666 = vsel %vm664, %v648, -1e+30
    %v667 = vsel %vm664, %v649, -1e+30
    %v668 = vsel %vm665, %v650, -1e+30
    %v669 = vsel %vm665, %v651, -1e+30
    %670 = vmax.xlane.f32.xlu0 %v666
    %v671 = vpop.xlane.xlu0 %670
    %672 = vmax.xlane.f32.xlu0 %v667
    %v673 = vpop.xlane.xlu0 %672
    %674 = vmax.xlane.f32.xlu0 %v668
    %v675 = vpop.xlane.xlu0 %674
    %676 = vmax.xlane.f32.xlu0 %v669
    %v677 = vpop.xlane.xlu0 %676
    %v678 = vsub.f32 %v666, %v671
    %v679 = vsub.f32 %v667, %v673
    %v680 = vsub.f32 %v668, %v675
    %v681 = vsub.f32 %v669, %v677
    %v682 = vmul.f32 %v678, 1.442695
    %v683 = vpow.pop %v682
    %v684 = vmul.f32 %v679, 1.442695
    %v685 = vpow.pop %v684
    %v686 = vmul.f32 %v680, 1.442695
    %v687 = vpow.pop %v686
    %v688 = vmul.f32 %v681, 1.442695
    %v689 = vpow.pop %v688
    %690 = vadd.xlane.f32.xlu0 %v683
    %v691 = vpop.xlane.xlu0 %690
    %692 = vadd.xlane.f32.xlu0 %v685
    %v693 = vpop.xlane.xlu0 %692
    %694 = vadd.xlane.f32.xlu0 %v687
    %v695 = vpop.xlane.xlu0 %694
    %696 = vadd.xlane.f32.xlu0 %v689
    %v697 = vpop.xlane.xlu0 %696
    %v698 = vrcp.pop %v691
    %v699 = vrcp.pop %v693
    %v700 = vrcp.pop %v695
    %v701 = vrcp.pop %v697
    %v702 = vmul.f32 %v683, %v698
    %v703 = vmul.f32 %v685, %v699
    %v704 = vmul.f32 %v687, %v700
    %v705 = vmul.f32 %v689, %v701
    %vm706 = vcmp.gt.f32.partialorder %v86, 0.0
    %vm707 = vcmp.gt.f32.partialorder %v87, 0.0
    %vm708 = vcmp.gt.f32.partialorder %v88, 0.0
    %vm709 = vcmp.gt.f32.partialorder %v89, 0.0
    %v710 = vsel %vm706, 1, 0
    %v711 = vsel %vm707, 1, 0
    %v712 = vsel %vm708, 1, 0
    %v713 = vsel %vm709, 1, 0
    %714 = vset.pattern.permute.xlu0 0
    %715 = vperm.xlu0 %714, %v710
    %v716 = vpop.permute.xlu0 %715
    %717 = vset.pattern.permute.xlu0 0
    %718 = vperm.xlu0 %717, %v711
    %v719 = vpop.permute.xlu0 %718
    %720 = vset.pattern.permute.xlu0 0
    %721 = vperm.xlu0 %720, %v712
    %v722 = vpop.permute.xlu0 %721
    %723 = vset.pattern.permute.xlu0 0
    %724 = vperm.xlu0 %723, %v713
    %v725 = vpop.permute.xlu0 %724
    %vm726 = vcmp.eq.s32.totalorder %v716, 1
    %vm727 = vcmp.eq.s32.totalorder %v719, 1
    %vm728 = vcmp.eq.s32.totalorder %v722, 1
    %vm729 = vcmp.eq.s32.totalorder %v725, 1
    %v730 = vsel %vm726, %v648, -1e+30
    %v731 = vsel %vm727, %v649, -1e+30
    %v732 = vsel %vm728, %v650, -1e+30
    %v733 = vsel %vm729, %v651, -1e+30
    %v734 = vmax.f32 %v730, %v731
    %v735 = vrot.slane %v734, 4
    %v736 = vmax.f32 %v734, %v735
    %v737 = vrot.slane %v736, 2
    %v738 = vmax.f32 %v736, %v737
    %v739 = vrot.slane %v738, 1
    %v740 = vmax.f32 %v738, %v739
    %v741 = vmax.f32 %v732, %v733
    %v742 = vrot.slane %v741, 4
    %v743 = vmax.f32 %v741, %v742
    %v744 = vrot.slane %v743, 2
    %v745 = vmax.f32 %v743, %v744
    %v746 = vrot.slane %v745, 1
    %v747 = vmax.f32 %v745, %v746
    %v748 = vsub.f32 %v730, %v740
    %v749 = vsub.f32 %v731, %v740
    %v750 = vsub.f32 %v732, %v747
    %v751 = vsub.f32 %v733, %v747
    %v752 = vmul.f32 %v748, 1.442695
    %v753 = vpow.pop %v752
    %v754 = vmul.f32 %v749, 1.442695
    %v755 = vpow.pop %v754
    %v756 = vmul.f32 %v750, 1.442695
    %v757 = vpow.pop %v756
    %v758 = vmul.f32 %v751, 1.442695
    %v759 = vpow.pop %v758
    %v760 = vadd.f32 %v753, %v755
    %v761 = vrot.slane %v760, 4
    %v762 = vadd.f32 %v760, %v761
    %v763 = vrot.slane %v762, 2
    %v764 = vadd.f32 %v762, %v763
    %v765 = vrot.slane %v764, 1
    %v766 = vadd.f32 %v764, %v765
    %v767 = vadd.f32 %v757, %v759
    %v768 = vrot.slane %v767, 4
    %v769 = vadd.f32 %v767, %v768
    %v770 = vrot.slane %v769, 2
    %v771 = vadd.f32 %v769, %v770
    %v772 = vrot.slane %v771, 1
    %v773 = vadd.f32 %v771, %v772
    %v774 = vrcp.pop %v766
    %v775 = vrcp.pop %v773
    %v776 = vmul.f32 %v753, %v774
    %v777 = vmul.f32 %v755, %v774
    %v778 = vmul.f32 %v757, %v775
    %v779 = vmul.f32 %v759, %v775
    %780 = vmatprep.subr.mxu0 0.0
    %781 = vmatpush1.msra.mxu0 %v65
    %782 = vmatprep.subr.mxu0 0.0
    %783 = vmatpush1.msra.mxu0 %v64
    %784 = vmatprep.subr.mxu0 0.0
    %785 = vmatpush1.msra.mxu0 %v63
    %786 = vmatprep.subr.mxu0 0.0
    %787 = vmatpush1.msra.mxu0 %v62
    %788 = vmatprep.subr.mxu0 0.0
    %789 = vmatpush1.msra.mxu0 %v61
    %790 = vmatprep.subr.mxu0 0.0
    %791 = vmatpush1.msra.mxu0 %v60
    %792 = vmatprep.subr.mxu0 0.0
    %793 = vmatpush1.msra.mxu0 %v59
    %794 = vmatprep.subr.mxu0 0.0
    %795 = vmatpush1.msra.mxu0 %v58
    %796 = vmatprep.subr.mxu0 0.0
    %797 = vmatpush1.msra.mxu0 %v57
    %798 = vmatprep.subr.mxu0 0.0
    %799 = vmatpush1.msra.mxu0 %v56
    %800 = vmatprep.subr.mxu0 0.0
    %801 = vmatpush1.msra.mxu0 %v55
    %802 = vmatprep.subr.mxu0 0.0
    %803 = vmatpush1.msra.mxu0 %v54
    %804 = vmatprep.subr.mxu0 0.0
    %805 = vmatpush1.msra.mxu0 %v53
    %806 = vmatprep.subr.mxu0 0.0
    %807 = vmatpush1.msra.mxu0 %v52
    %808 = vmatprep.subr.mxu0 0.0
    %809 = vmatpush1.msra.mxu0 %v51
    %810 = vmatprep.subr.mxu0 0.0
    %811 = vmatpush1.msra.mxu0 %v50
    %812 = vmatprep.subr.mxu0 0.0
    %813 = vmatpush2.msra.mxu0 0.0
    %814 = vmatprep.subr.mxu0 0.0
    %815 = vmatpush2.msra.mxu0 0.0
    %816 = vmatprep.subr.mxu0 0.0
    %817 = vmatpush2.msra.mxu0 0.0
    %818 = vmatprep.subr.mxu0 0.0
    %819 = vmatpush2.msra.mxu0 0.0
    %820 = vmatprep.subr.mxu0 0.0
    %821 = vmatpush2.msra.mxu0 0.0
    %822 = vmatprep.subr.mxu0 0.0
    %823 = vmatpush2.msra.mxu0 0.0
    %824 = vmatprep.subr.mxu0 0.0
    %825 = vmatpush2.msra.mxu0 0.0
    %826 = vmatprep.subr.mxu0 0.0
    %827 = vmatpush2.msra.mxu0 0.0
    %828 = vmatprep.subr.mxu0 0.0
    %829 = vmatpush2.msra.mxu0 0.0
    %830 = vmatprep.subr.mxu0 0.0
    %831 = vmatpush2.msra.mxu0 0.0
    %832 = vmatprep.subr.mxu0 0.0
    %833 = vmatpush2.msra.mxu0 0.0
    %834 = vmatprep.subr.mxu0 0.0
    %835 = vmatpush2.msra.mxu0 0.0
    %836 = vmatprep.subr.mxu0 0.0
    %837 = vmatpush2.msra.mxu0 0.0
    %838 = vmatprep.subr.mxu0 0.0
    %839 = vmatpush2.msra.mxu0 0.0
    %840 = vmatprep.subr.mxu0 0.0
    %841 = vmatpush2.msra.mxu0 0.0
    %842 = vmatprep.subr.mxu0 0.0
    %843 = vmatpush2.msra.mxu0 0.0
    %844 = vmatprep.mubr.f32.mxu0 0.0
    %845 = vmatmul.mubr.f32.gmra.mxu0 %v702
    %v846 = vpop.f32.mrf.mxu0
    %v847 = vadd.f32 0.0, %v846
    %v848 = vpop.f32.mrf.mxu0
    %849 = vmatprep.mubr.f32.mxu0 0.0
    %850 = vmatmul.mubr.f32.gmra.mxu0 %v703
    %v851 = vpop.f32.mrf.mxu0
    %v852 = vadd.f32 0.0, %v851
    %v853 = vpop.f32.mrf.mxu0
    %854 = vdwg.mxu0
    %855 = vmatprep.subr.mxu0 0.0
    %856 = vmatpush1.msra.mxu0 %v81
    %857 = vmatprep.subr.mxu0 0.0
    %858 = vmatpush1.msra.mxu0 %v80
    %859 = vmatprep.subr.mxu0 0.0
    %860 = vmatpush1.msra.mxu0 %v79
    %861 = vmatprep.subr.mxu0 0.0
    %862 = vmatpush1.msra.mxu0 %v78
    %863 = vmatprep.subr.mxu0 0.0
    %864 = vmatpush1.msra.mxu0 %v77
    %865 = vmatprep.subr.mxu0 0.0
    %866 = vmatpush1.msra.mxu0 %v76
    %867 = vmatprep.subr.mxu0 0.0
    %868 = vmatpush1.msra.mxu0 %v75
    %869 = vmatprep.subr.mxu0 0.0
    %870 = vmatpush1.msra.mxu0 %v74
    %871 = vmatprep.subr.mxu0 0.0
    %872 = vmatpush1.msra.mxu0 %v73
    %873 = vmatprep.subr.mxu0 0.0
    %874 = vmatpush1.msra.mxu0 %v72
    %875 = vmatprep.subr.mxu0 0.0
    %876 = vmatpush1.msra.mxu0 %v71
    %877 = vmatprep.subr.mxu0 0.0
    %878 = vmatpush1.msra.mxu0 %v70
    %879 = vmatprep.subr.mxu0 0.0
    %880 = vmatpush1.msra.mxu0 %v69
    %881 = vmatprep.subr.mxu0 0.0
    %882 = vmatpush1.msra.mxu0 %v68
    %883 = vmatprep.subr.mxu0 0.0
    %884 = vmatpush1.msra.mxu0 %v67
    %885 = vmatprep.subr.mxu0 0.0
    %886 = vmatpush1.msra.mxu0 %v66
    %887 = vmatprep.subr.mxu0 0.0
    %888 = vmatpush2.msra.mxu0 0.0
    %889 = vmatprep.subr.mxu0 0.0
    %890 = vmatpush2.msra.mxu0 0.0
    %891 = vmatprep.subr.mxu0 0.0
    %892 = vmatpush2.msra.mxu0 0.0
    %893 = vmatprep.subr.mxu0 0.0
    %894 = vmatpush2.msra.mxu0 0.0
    %895 = vmatprep.subr.mxu0 0.0
    %896 = vmatpush2.msra.mxu0 0.0
    %897 = vmatprep.subr.mxu0 0.0
    %898 = vmatpush2.msra.mxu0 0.0
    %899 = vmatprep.subr.mxu0 0.0
    %900 = vmatpush2.msra.mxu0 0.0
    %901 = vmatprep.subr.mxu0 0.0
    %902 = vmatpush2.msra.mxu0 0.0
    %903 = vmatprep.subr.mxu0 0.0
    %904 = vmatpush2.msra.mxu0 0.0
    %905 = vmatprep.subr.mxu0 0.0
    %906 = vmatpush2.msra.mxu0 0.0
    %907 = vmatprep.subr.mxu0 0.0
    %908 = vmatpush2.msra.mxu0 0.0
    %909 = vmatprep.subr.mxu0 0.0
    %910 = vmatpush2.msra.mxu0 0.0
    %911 = vmatprep.subr.mxu0 0.0
    %912 = vmatpush2.msra.mxu0 0.0
    %913 = vmatprep.subr.mxu0 0.0
    %914 = vmatpush2.msra.mxu0 0.0
    %915 = vmatprep.subr.mxu0 0.0
    %916 = vmatpush2.msra.mxu0 0.0
    %917 = vmatprep.subr.mxu0 0.0
    %918 = vmatpush2.msra.mxu0 0.0
    %919 = vmatprep.mubr.f32.mxu0 0.0
    %920 = vmatmul.mubr.f32.gmra.mxu0 %v704
    %v921 = vpop.f32.mrf.mxu0
    %v922 = vadd.f32 0.0, %v921
    %v923 = vpop.f32.mrf.mxu0
    %924 = vmatprep.mubr.f32.mxu0 0.0
    %925 = vmatmul.mubr.f32.gmra.mxu0 %v705
    %v926 = vpop.f32.mrf.mxu0
    %v927 = vadd.f32 0.0, %v926
    %v928 = vpop.f32.mrf.mxu0
    %929 = vdwg.mxu0
    %930 = vxpose.xlu0.b32.start [1/16] %v776, 128
    %931 = vxpose.xlu0.b32.cont [2/16] %v777, 128
    %932 = vxpose.xlu0.b32.cont [3/16] 0.0, 128
    %933 = vxpose.xlu0.b32.cont [4/16] 0.0, 128
    %934 = vxpose.xlu0.b32.cont [5/16] 0.0, 128
    %935 = vxpose.xlu0.b32.cont [6/16] 0.0, 128
    %936 = vxpose.xlu0.b32.cont [7/16] 0.0, 128
    %937 = vxpose.xlu0.b32.cont [8/16] 0.0, 128
    %938 = vxpose.xlu0.b32.cont [9/16] 0.0, 128
    %939 = vxpose.xlu0.b32.cont [10/16] 0.0, 128
    %940 = vxpose.xlu0.b32.cont [11/16] 0.0, 128
    %941 = vxpose.xlu0.b32.cont [12/16] 0.0, 128
    %942 = vxpose.xlu0.b32.cont [13/16] 0.0, 128
    %943 = vxpose.xlu0.b32.cont [14/16] 0.0, 128
    %944 = vxpose.xlu0.b32.cont [15/16] 0.0, 128
    %945 = vxpose.xlu0.b32.end [16/16] 0.0, 128
    %v946 = vpop.trf.xlu0
    %v947 = vpop.trf.xlu0
    %v948 = vpop.trf.xlu0
    %v949 = vpop.trf.xlu0
    %v950 = vpop.trf.xlu0
    %v951 = vpop.trf.xlu0
    %v952 = vpop.trf.xlu0
    %v953 = vpop.trf.xlu0
    %v954 = vpop.trf.xlu0
    %v955 = vpop.trf.xlu0
    %v956 = vpop.trf.xlu0
    %v957 = vpop.trf.xlu0
    %v958 = vpop.trf.xlu0
    %v959 = vpop.trf.xlu0
    %v960 = vpop.trf.xlu0
    %v961 = vpop.trf.xlu0
    %vm962 = vcmask 130048
    %v964 = vsel %vm962, %v946, 0
    %v967 = vsel %vm962, %v947, 0
    %v970 = vsel %vm962, %v948, 0
    %v973 = vsel %vm962, %v949, 0
    %v976 = vsel %vm962, %v950, 0
    %v979 = vsel %vm962, %v951, 0
    %v982 = vsel %vm962, %v952, 0
    %v985 = vsel %vm962, %v953, 0
    %v988 = vsel %vm962, %v954, 0
    %v991 = vsel %vm962, %v955, 0
    %v994 = vsel %vm962, %v956, 0
    %v997 = vsel %vm962, %v957, 0
    %v1000 = vsel %vm962, %v958, 0
    %v1003 = vsel %vm962, %v959, 0
    %v1006 = vsel %vm962, %v960, 0
    %v1009 = vsel %vm962, %v961, 0
    %1011 = vmatprep.subr.mxu0 0.0
    %1012 = vmatpush1.msra.mxu0 0.0
    %1013 = vmatprep.subr.mxu0 0.0
    %1014 = vmatpush1.msra.mxu0 0.0
    %1015 = vmatprep.subr.mxu0 0.0
    %1016 = vmatpush1.msra.mxu0 0.0
    %1017 = vmatprep.subr.mxu0 0.0
    %1018 = vmatpush1.msra.mxu0 0.0
    %1019 = vmatprep.subr.mxu0 0.0
    %1020 = vmatpush1.msra.mxu0 0.0
    %1021 = vmatprep.subr.mxu0 0.0
    %1022 = vmatpush1.msra.mxu0 0.0
    %1023 = vmatprep.subr.mxu0 0.0
    %1024 = vmatpush1.msra.mxu0 0.0
    %1025 = vmatprep.subr.mxu0 0.0
    %1026 = vmatpush1.msra.mxu0 0.0
    %1027 = vmatprep.subr.mxu0 0.0
    %1028 = vmatpush1.msra.mxu0 0.0
    %1029 = vmatprep.subr.mxu0 0.0
    %1030 = vmatpush1.msra.mxu0 0.0
    %1031 = vmatprep.subr.mxu0 0.0
    %1032 = vmatpush1.msra.mxu0 0.0
    %1033 = vmatprep.subr.mxu0 0.0
    %1034 = vmatpush1.msra.mxu0 0.0
    %1035 = vmatprep.subr.mxu0 0.0
    %1036 = vmatpush1.msra.mxu0 0.0
    %1037 = vmatprep.subr.mxu0 0.0
    %1038 = vmatpush1.msra.mxu0 0.0
    %1039 = vmatprep.subr.mxu0 0.0
    %1040 = vmatpush1.msra.mxu0 %v47
    %1041 = vmatprep.subr.mxu0 0.0
    %1042 = vmatpush1.msra.mxu0 %v46
    %1043 = vmatprep.subr.mxu0 0.0
    %1044 = vmatpush2.msra.mxu0 0.0
    %1045 = vmatprep.subr.mxu0 0.0
    %1046 = vmatpush2.msra.mxu0 0.0
    %1047 = vmatprep.subr.mxu0 0.0
    %1048 = vmatpush2.msra.mxu0 0.0
    %1049 = vmatprep.subr.mxu0 0.0
    %1050 = vmatpush2.msra.mxu0 0.0
    %1051 = vmatprep.subr.mxu0 0.0
    %1052 = vmatpush2.msra.mxu0 0.0
    %1053 = vmatprep.subr.mxu0 0.0
    %1054 = vmatpush2.msra.mxu0 0.0
    %1055 = vmatprep.subr.mxu0 0.0
    %1056 = vmatpush2.msra.mxu0 0.0
    %1057 = vmatprep.subr.mxu0 0.0
    %1058 = vmatpush2.msra.mxu0 0.0
    %1059 = vmatprep.subr.mxu0 0.0
    %1060 = vmatpush2.msra.mxu0 0.0
    %1061 = vmatprep.subr.mxu0 0.0
    %1062 = vmatpush2.msra.mxu0 0.0
    %1063 = vmatprep.subr.mxu0 0.0
    %1064 = vmatpush2.msra.mxu0 0.0
    %1065 = vmatprep.subr.mxu0 0.0
    %1066 = vmatpush2.msra.mxu0 0.0
    %1067 = vmatprep.subr.mxu0 0.0
    %1068 = vmatpush2.msra.mxu0 0.0
    %1069 = vmatprep.subr.mxu0 0.0
    %1070 = vmatpush2.msra.mxu0 0.0
    %1071 = vmatprep.subr.mxu0 0.0
    %1072 = vmatpush2.msra.mxu0 0.0
    %1073 = vmatprep.subr.mxu0 0.0
    %1074 = vmatpush2.msra.mxu0 0.0
    %1075 = vmatprep.mubr.f32.mxu0 0.0
    %1076 = vmatmul.mubr.f32.gmra.mxu0 %v964
    %v1077 = vpop.f32.mrf.mxu0
    %v1078 = vadd.f32 0.0, %v1077
    %v1079 = vpop.f32.mrf.mxu0
    %1080 = vmatprep.mubr.f32.mxu0 0.0
    %1081 = vmatmul.mubr.f32.gmra.mxu0 %v967
    %v1082 = vpop.f32.mrf.mxu0
    %v1083 = vadd.f32 0.0, %v1082
    %v1084 = vpop.f32.mrf.mxu0
    %1085 = vmatprep.mubr.f32.mxu0 0.0
    %1086 = vmatmul.mubr.f32.gmra.mxu0 %v970
    %v1087 = vpop.f32.mrf.mxu0
    %v1088 = vadd.f32 0.0, %v1087
    %v1089 = vpop.f32.mrf.mxu0
    %1090 = vmatprep.mubr.f32.mxu0 0.0
    %1091 = vmatmul.mubr.f32.gmra.mxu0 %v973
    %v1092 = vpop.f32.mrf.mxu0
    %v1093 = vadd.f32 0.0, %v1092
    %v1094 = vpop.f32.mrf.mxu0
    %1095 = vmatprep.mubr.f32.mxu0 0.0
    %1096 = vmatmul.mubr.f32.gmra.mxu0 %v976
    %v1097 = vpop.f32.mrf.mxu0
    %v1098 = vadd.f32 0.0, %v1097
    %v1099 = vpop.f32.mrf.mxu0
    %1100 = vmatprep.mubr.f32.mxu0 0.0
    %1101 = vmatmul.mubr.f32.gmra.mxu0 %v979
    %v1102 = vpop.f32.mrf.mxu0
    %v1103 = vadd.f32 0.0, %v1102
    %v1104 = vpop.f32.mrf.mxu0
    %1105 = vmatprep.mubr.f32.mxu0 0.0
    %1106 = vmatmul.mubr.f32.gmra.mxu0 %v982
    %v1107 = vpop.f32.mrf.mxu0
    %v1108 = vadd.f32 0.0, %v1107
    %v1109 = vpop.f32.mrf.mxu0
    %1110 = vmatprep.mubr.f32.mxu0 0.0
    %1111 = vmatmul.mubr.f32.gmra.mxu0 %v985
    %v1112 = vpop.f32.mrf.mxu0
    %v1113 = vadd.f32 0.0, %v1112
    %v1114 = vpop.f32.mrf.mxu0
    %1115 = vmatprep.mubr.f32.mxu0 0.0
    %1116 = vmatmul.mubr.f32.gmra.mxu0 %v988
    %v1117 = vpop.f32.mrf.mxu0
    %v1118 = vadd.f32 0.0, %v1117
    %v1119 = vpop.f32.mrf.mxu0
    %1120 = vmatprep.mubr.f32.mxu0 0.0
    %1121 = vmatmul.mubr.f32.gmra.mxu0 %v991
    %v1122 = vpop.f32.mrf.mxu0
    %v1123 = vadd.f32 0.0, %v1122
    %v1124 = vpop.f32.mrf.mxu0
    %1125 = vmatprep.mubr.f32.mxu0 0.0
    %1126 = vmatmul.mubr.f32.gmra.mxu0 %v994
    %v1127 = vpop.f32.mrf.mxu0
    %v1128 = vadd.f32 0.0, %v1127
    %v1129 = vpop.f32.mrf.mxu0
    %1130 = vmatprep.mubr.f32.mxu0 0.0
    %1131 = vmatmul.mubr.f32.gmra.mxu0 %v997
    %v1132 = vpop.f32.mrf.mxu0
    %v1133 = vadd.f32 0.0, %v1132
    %v1134 = vpop.f32.mrf.mxu0
    %1135 = vmatprep.mubr.f32.mxu0 0.0
    %1136 = vmatmul.mubr.f32.gmra.mxu0 %v1000
    %v1137 = vpop.f32.mrf.mxu0
    %v1138 = vadd.f32 0.0, %v1137
    %v1139 = vpop.f32.mrf.mxu0
    %1140 = vmatprep.mubr.f32.mxu0 0.0
    %1141 = vmatmul.mubr.f32.gmra.mxu0 %v1003
    %v1142 = vpop.f32.mrf.mxu0
    %v1143 = vadd.f32 0.0, %v1142
    %v1144 = vpop.f32.mrf.mxu0
    %1145 = vmatprep.mubr.f32.mxu0 0.0
    %1146 = vmatmul.mubr.f32.gmra.mxu0 %v1006
    %v1147 = vpop.f32.mrf.mxu0
    %v1148 = vadd.f32 0.0, %v1147
    %v1149 = vpop.f32.mrf.mxu0
    %1150 = vmatprep.mubr.f32.mxu0 0.0
    %1151 = vmatmul.mubr.f32.gmra.mxu0 %v1009
    %v1152 = vpop.f32.mrf.mxu0
    %v1153 = vadd.f32 0.0, %v1152
    %v1154 = vpop.f32.mrf.mxu0
    %1155 = vdwg.mxu0
    %1156 = vxpose.xlu0.b32.start [1/16] %v778, 128
    %1157 = vxpose.xlu0.b32.cont [2/16] %v779, 128
    %1158 = vxpose.xlu0.b32.cont [3/16] 0.0, 128
    %1159 = vxpose.xlu0.b32.cont [4/16] 0.0, 128
    %1160 = vxpose.xlu0.b32.cont [5/16] 0.0, 128
    %1161 = vxpose.xlu0.b32.cont [6/16] 0.0, 128
    %1162 = vxpose.xlu0.b32.cont [7/16] 0.0, 128
    %1163 = vxpose.xlu0.b32.cont [8/16] 0.0, 128
    %1164 = vxpose.xlu0.b32.cont [9/16] 0.0, 128
    %1165 = vxpose.xlu0.b32.cont [10/16] 0.0, 128
    %1166 = vxpose.xlu0.b32.cont [11/16] 0.0, 128
    %1167 = vxpose.xlu0.b32.cont [12/16] 0.0, 128
    %1168 = vxpose.xlu0.b32.cont [13/16] 0.0, 128
    %1169 = vxpose.xlu0.b32.cont [14/16] 0.0, 128
    %1170 = vxpose.xlu0.b32.cont [15/16] 0.0, 128
    %1171 = vxpose.xlu0.b32.end [16/16] 0.0, 128
    %v1172 = vpop.trf.xlu0
    %v1173 = vpop.trf.xlu0
    %v1174 = vpop.trf.xlu0
    %v1175 = vpop.trf.xlu0
    %v1176 = vpop.trf.xlu0
    %v1177 = vpop.trf.xlu0
    %v1178 = vpop.trf.xlu0
    %v1179 = vpop.trf.xlu0
    %v1180 = vpop.trf.xlu0
    %v1181 = vpop.trf.xlu0
    %v1182 = vpop.trf.xlu0
    %v1183 = vpop.trf.xlu0
    %v1184 = vpop.trf.xlu0
    %v1185 = vpop.trf.xlu0
    %v1186 = vpop.trf.xlu0
    %v1187 = vpop.trf.xlu0
    %v1189 = vsel %vm962, %v1172, 0
    %v1192 = vsel %vm962, %v1173, 0
    %v1195 = vsel %vm962, %v1174, 0
    %v1198 = vsel %vm962, %v1175, 0
    %v1201 = vsel %vm962, %v1176, 0
    %v1204 = vsel %vm962, %v1177, 0
    %v1207 = vsel %vm962, %v1178, 0
    %v1210 = vsel %vm962, %v1179, 0
    %v1213 = vsel %vm962, %v1180, 0
    %v1216 = vsel %vm962, %v1181, 0
    %v1219 = vsel %vm962, %v1182, 0
    %v1222 = vsel %vm962, %v1183, 0
    %v1225 = vsel %vm962, %v1184, 0
    %v1228 = vsel %vm962, %v1185, 0
    %v1231 = vsel %vm962, %v1186, 0
    %v1234 = vsel %vm962, %v1187, 0
    %1236 = vmatprep.subr.mxu0 0.0
    %1237 = vmatpush1.msra.mxu0 0.0
    %1238 = vmatprep.subr.mxu0 0.0
    %1239 = vmatpush1.msra.mxu0 0.0
    %1240 = vmatprep.subr.mxu0 0.0
    %1241 = vmatpush1.msra.mxu0 0.0
    %1242 = vmatprep.subr.mxu0 0.0
    %1243 = vmatpush1.msra.mxu0 0.0
    %1244 = vmatprep.subr.mxu0 0.0
    %1245 = vmatpush1.msra.mxu0 0.0
    %1246 = vmatprep.subr.mxu0 0.0
    %1247 = vmatpush1.msra.mxu0 0.0
    %1248 = vmatprep.subr.mxu0 0.0
    %1249 = vmatpush1.msra.mxu0 0.0
    %1250 = vmatprep.subr.mxu0 0.0
    %1251 = vmatpush1.msra.mxu0 0.0
    %1252 = vmatprep.subr.mxu0 0.0
    %1253 = vmatpush1.msra.mxu0 0.0
    %1254 = vmatprep.subr.mxu0 0.0
    %1255 = vmatpush1.msra.mxu0 0.0
    %1256 = vmatprep.subr.mxu0 0.0
    %1257 = vmatpush1.msra.mxu0 0.0
    %1258 = vmatprep.subr.mxu0 0.0
    %1259 = vmatpush1.msra.mxu0 0.0
    %1260 = vmatprep.subr.mxu0 0.0
    %1261 = vmatpush1.msra.mxu0 0.0
    %1262 = vmatprep.subr.mxu0 0.0
    %1263 = vmatpush1.msra.mxu0 0.0
    %1264 = vmatprep.subr.mxu0 0.0
    %1265 = vmatpush1.msra.mxu0 %v49
    %1266 = vmatprep.subr.mxu0 0.0
    %1267 = vmatpush1.msra.mxu0 %v48
    %1268 = vmatprep.subr.mxu0 0.0
    %1269 = vmatpush2.msra.mxu0 0.0
    %1270 = vmatprep.subr.mxu0 0.0
    %1271 = vmatpush2.msra.mxu0 0.0
    %1272 = vmatprep.subr.mxu0 0.0
    %1273 = vmatpush2.msra.mxu0 0.0
    %1274 = vmatprep.subr.mxu0 0.0
    %1275 = vmatpush2.msra.mxu0 0.0
    %1276 = vmatprep.subr.mxu0 0.0
    %1277 = vmatpush2.msra.mxu0 0.0
    %1278 = vmatprep.subr.mxu0 0.0
    %1279 = vmatpush2.msra.mxu0 0.0
    %1280 = vmatprep.subr.mxu0 0.0
    %1281 = vmatpush2.msra.mxu0 0.0
    %1282 = vmatprep.subr.mxu0 0.0
    %1283 = vmatpush2.msra.mxu0 0.0
    %1284 = vmatprep.subr.mxu0 0.0
    %1285 = vmatpush2.msra.mxu0 0.0
    %1286 = vmatprep.subr.mxu0 0.0
    %1287 = vmatpush2.msra.mxu0 0.0
    %1288 = vmatprep.subr.mxu0 0.0
    %1289 = vmatpush2.msra.mxu0 0.0
    %1290 = vmatprep.subr.mxu0 0.0
    %1291 = vmatpush2.msra.mxu0 0.0
    %1292 = vmatprep.subr.mxu0 0.0
    %1293 = vmatpush2.msra.mxu0 0.0
    %1294 = vmatprep.subr.mxu0 0.0
    %1295 = vmatpush2.msra.mxu0 0.0
    %1296 = vmatprep.subr.mxu0 0.0
    %1297 = vmatpush2.msra.mxu0 0.0
    %1298 = vmatprep.subr.mxu0 0.0
    %1299 = vmatpush2.msra.mxu0 0.0
    %1300 = vmatprep.mubr.f32.mxu0 0.0
    %1301 = vmatmul.mubr.f32.gmra.mxu0 %v1189
    %v1302 = vpop.f32.mrf.mxu0
    %v1303 = vadd.f32 0.0, %v1302
    %v1304 = vpop.f32.mrf.mxu0
    %1305 = vmatprep.mubr.f32.mxu0 0.0
    %1306 = vmatmul.mubr.f32.gmra.mxu0 %v1192
    %v1307 = vpop.f32.mrf.mxu0
    %v1308 = vadd.f32 0.0, %v1307
    %v1309 = vpop.f32.mrf.mxu0
    %1310 = vmatprep.mubr.f32.mxu0 0.0
    %1311 = vmatmul.mubr.f32.gmra.mxu0 %v1195
    %v1312 = vpop.f32.mrf.mxu0
    %v1313 = vadd.f32 0.0, %v1312
    %v1314 = vpop.f32.mrf.mxu0
    %1315 = vmatprep.mubr.f32.mxu0 0.0
    %1316 = vmatmul.mubr.f32.gmra.mxu0 %v1198
    %v1317 = vpop.f32.mrf.mxu0
    %v1318 = vadd.f32 0.0, %v1317
    %v1319 = vpop.f32.mrf.mxu0
    %1320 = vmatprep.mubr.f32.mxu0 0.0
    %1321 = vmatmul.mubr.f32.gmra.mxu0 %v1201
    %v1322 = vpop.f32.mrf.mxu0
    %v1323 = vadd.f32 0.0, %v1322
    %v1324 = vpop.f32.mrf.mxu0
    %1325 = vmatprep.mubr.f32.mxu0 0.0
    %1326 = vmatmul.mubr.f32.gmra.mxu0 %v1204
    %v1327 = vpop.f32.mrf.mxu0
    %v1328 = vadd.f32 0.0, %v1327
    %v1329 = vpop.f32.mrf.mxu0
    %1330 = vmatprep.mubr.f32.mxu0 0.0
    %1331 = vmatmul.mubr.f32.gmra.mxu0 %v1207
    %v1332 = vpop.f32.mrf.mxu0
    %v1333 = vadd.f32 0.0, %v1332
    %v1334 = vpop.f32.mrf.mxu0
    %1335 = vmatprep.mubr.f32.mxu0 0.0
    %1336 = vmatmul.mubr.f32.gmra.mxu0 %v1210
    %v1337 = vpop.f32.mrf.mxu0
    %v1338 = vadd.f32 0.0, %v1337
    %v1339 = vpop.f32.mrf.mxu0
    %1340 = vmatprep.mubr.f32.mxu0 0.0
    %1341 = vmatmul.mubr.f32.gmra.mxu0 %v1213
    %v1342 = vpop.f32.mrf.mxu0
    %v1343 = vadd.f32 0.0, %v1342
    %v1344 = vpop.f32.mrf.mxu0
    %1345 = vmatprep.mubr.f32.mxu0 0.0
    %1346 = vmatmul.mubr.f32.gmra.mxu0 %v1216
    %v1347 = vpop.f32.mrf.mxu0
    %v1348 = vadd.f32 0.0, %v1347
    %v1349 = vpop.f32.mrf.mxu0
    %1350 = vmatprep.mubr.f32.mxu0 0.0
    %1351 = vmatmul.mubr.f32.gmra.mxu0 %v1219
    %v1352 = vpop.f32.mrf.mxu0
    %v1353 = vadd.f32 0.0, %v1352
    %v1354 = vpop.f32.mrf.mxu0
    %1355 = vmatprep.mubr.f32.mxu0 0.0
    %1356 = vmatmul.mubr.f32.gmra.mxu0 %v1222
    %v1357 = vpop.f32.mrf.mxu0
    %v1358 = vadd.f32 0.0, %v1357
    %v1359 = vpop.f32.mrf.mxu0
    %1360 = vmatprep.mubr.f32.mxu0 0.0
    %1361 = vmatmul.mubr.f32.gmra.mxu0 %v1225
    %v1362 = vpop.f32.mrf.mxu0
    %v1363 = vadd.f32 0.0, %v1362
    %v1364 = vpop.f32.mrf.mxu0
    %1365 = vmatprep.mubr.f32.mxu0 0.0
    %1366 = vmatmul.mubr.f32.gmra.mxu0 %v1228
    %v1367 = vpop.f32.mrf.mxu0
    %v1368 = vadd.f32 0.0, %v1367
    %v1369 = vpop.f32.mrf.mxu0
    %1370 = vmatprep.mubr.f32.mxu0 0.0
    %1371 = vmatmul.mubr.f32.gmra.mxu0 %v1231
    %v1372 = vpop.f32.mrf.mxu0
    %v1373 = vadd.f32 0.0, %v1372
    %v1374 = vpop.f32.mrf.mxu0
    %1375 = vmatprep.mubr.f32.mxu0 0.0
    %1376 = vmatmul.mubr.f32.gmra.mxu0 %v1234
    %v1377 = vpop.f32.mrf.mxu0
    %v1378 = vadd.f32 0.0, %v1377
    %v1379 = vpop.f32.mrf.mxu0
    %1380 = vdwg.mxu0
    %1381 = vmatprep.subr.mxu0 0.0
    %1382 = vmatpush1.msra.mxu0 %v1153
    %1383 = vmatprep.subr.mxu0 0.0
    %1384 = vmatpush1.msra.mxu0 %v1148
    %1385 = vmatprep.subr.mxu0 0.0
    %1386 = vmatpush1.msra.mxu0 %v1143
    %1387 = vmatprep.subr.mxu0 0.0
    %1388 = vmatpush1.msra.mxu0 %v1138
    %1389 = vmatprep.subr.mxu0 0.0
    %1390 = vmatpush1.msra.mxu0 %v1133
    %1391 = vmatprep.subr.mxu0 0.0
    %1392 = vmatpush1.msra.mxu0 %v1128
    %1393 = vmatprep.subr.mxu0 0.0
    %1394 = vmatpush1.msra.mxu0 %v1123
    %1395 = vmatprep.subr.mxu0 0.0
    %1396 = vmatpush1.msra.mxu0 %v1118
    %1397 = vmatprep.subr.mxu0 0.0
    %1398 = vmatpush1.msra.mxu0 %v1113
    %1399 = vmatprep.subr.mxu0 0.0
    %1400 = vmatpush1.msra.mxu0 %v1108
    %1401 = vmatprep.subr.mxu0 0.0
    %1402 = vmatpush1.msra.mxu0 %v1103
    %1403 = vmatprep.subr.mxu0 0.0
    %1404 = vmatpush1.msra.mxu0 %v1098
    %1405 = vmatprep.subr.mxu0 0.0
    %1406 = vmatpush1.msra.mxu0 %v1093
    %1407 = vmatprep.subr.mxu0 0.0
    %1408 = vmatpush1.msra.mxu0 %v1088
    %1409 = vmatprep.subr.mxu0 0.0
    %1410 = vmatpush1.msra.mxu0 %v1083
    %1411 = vmatprep.subr.mxu0 0.0
    %1412 = vmatpush1.msra.mxu0 %v1078
    %1413 = vmatprep.subr.mxu0 0.0
    %1414 = vmatpush2.msra.mxu0 0.0
    %1415 = vmatprep.subr.mxu0 0.0
    %1416 = vmatpush2.msra.mxu0 0.0
    %1417 = vmatprep.subr.mxu0 0.0
    %1418 = vmatpush2.msra.mxu0 0.0
    %1419 = vmatprep.subr.mxu0 0.0
    %1420 = vmatpush2.msra.mxu0 0.0
    %1421 = vmatprep.subr.mxu0 0.0
    %1422 = vmatpush2.msra.mxu0 0.0
    %1423 = vmatprep.subr.mxu0 0.0
    %1424 = vmatpush2.msra.mxu0 0.0
    %1425 = vmatprep.subr.mxu0 0.0
    %1426 = vmatpush2.msra.mxu0 0.0
    %1427 = vmatprep.subr.mxu0 0.0
    %1428 = vmatpush2.msra.mxu0 0.0
    %1429 = vmatprep.subr.mxu0 0.0
    %1430 = vmatpush2.msra.mxu0 0.0
    %1431 = vmatprep.subr.mxu0 0.0
    %1432 = vmatpush2.msra.mxu0 0.0
    %1433 = vmatprep.subr.mxu0 0.0
    %1434 = vmatpush2.msra.mxu0 0.0
    %1435 = vmatprep.subr.mxu0 0.0
    %1436 = vmatpush2.msra.mxu0 0.0
    %1437 = vmatprep.subr.mxu0 0.0
    %1438 = vmatpush2.msra.mxu0 0.0
    %1439 = vmatprep.subr.mxu0 0.0
    %1440 = vmatpush2.msra.mxu0 0.0
    %1441 = vmatprep.subr.mxu0 0.0
    %1442 = vmatpush2.msra.mxu0 0.0
    %1443 = vmatprep.subr.mxu0 0.0
    %1444 = vmatpush2.msra.mxu0 0.0
    %1445 = vmatprep.mubr.f32.mxu0 0.0
    %1446 = vmatmul.mubr.f32.gmra.mxu0 %v702
    %v1447 = vpop.f32.mrf.mxu0
    %v1448 = vadd.f32 0.0, %v1447
    %v1449 = vpop.f32.mrf.mxu0
    %1450 = vmatprep.mubr.f32.mxu0 0.0
    %1451 = vmatmul.mubr.f32.gmra.mxu0 %v703
    %v1452 = vpop.f32.mrf.mxu0
    %v1453 = vadd.f32 0.0, %v1452
    %v1454 = vpop.f32.mrf.mxu0
    %1455 = vdwg.mxu0
    %1456 = vmatprep.subr.mxu0 0.0
    %1457 = vmatpush1.msra.mxu0 %v1378
    %1458 = vmatprep.subr.mxu0 0.0
    %1459 = vmatpush1.msra.mxu0 %v1373
    %1460 = vmatprep.subr.mxu0 0.0
    %1461 = vmatpush1.msra.mxu0 %v1368
    %1462 = vmatprep.subr.mxu0 0.0
    %1463 = vmatpush1.msra.mxu0 %v1363
    %1464 = vmatprep.subr.mxu0 0.0
    %1465 = vmatpush1.msra.mxu0 %v1358
    %1466 = vmatprep.subr.mxu0 0.0
    %1467 = vmatpush1.msra.mxu0 %v1353
    %1468 = vmatprep.subr.mxu0 0.0
    %1469 = vmatpush1.msra.mxu0 %v1348
    %1470 = vmatprep.subr.mxu0 0.0
    %1471 = vmatpush1.msra.mxu0 %v1343
    %1472 = vmatprep.subr.mxu0 0.0
    %1473 = vmatpush1.msra.mxu0 %v1338
    %1474 = vmatprep.subr.mxu0 0.0
    %1475 = vmatpush1.msra.mxu0 %v1333
    %1476 = vmatprep.subr.mxu0 0.0
    %1477 = vmatpush1.msra.mxu0 %v1328
    %1478 = vmatprep.subr.mxu0 0.0
    %1479 = vmatpush1.msra.mxu0 %v1323
    %1480 = vmatprep.subr.mxu0 0.0
    %1481 = vmatpush1.msra.mxu0 %v1318
    %1482 = vmatprep.subr.mxu0 0.0
    %1483 = vmatpush1.msra.mxu0 %v1313
    %1484 = vmatprep.subr.mxu0 0.0
    %1485 = vmatpush1.msra.mxu0 %v1308
    %1486 = vmatprep.subr.mxu0 0.0
    %1487 = vmatpush1.msra.mxu0 %v1303
    %1488 = vmatprep.subr.mxu0 0.0
    %1489 = vmatpush2.msra.mxu0 0.0
    %1490 = vmatprep.subr.mxu0 0.0
    %1491 = vmatpush2.msra.mxu0 0.0
    %1492 = vmatprep.subr.mxu0 0.0
    %1493 = vmatpush2.msra.mxu0 0.0
    %1494 = vmatprep.subr.mxu0 0.0
    %1495 = vmatpush2.msra.mxu0 0.0
    %1496 = vmatprep.subr.mxu0 0.0
    %1497 = vmatpush2.msra.mxu0 0.0
    %1498 = vmatprep.subr.mxu0 0.0
    %1499 = vmatpush2.msra.mxu0 0.0
    %1500 = vmatprep.subr.mxu0 0.0
    %1501 = vmatpush2.msra.mxu0 0.0
    %1502 = vmatprep.subr.mxu0 0.0
    %1503 = vmatpush2.msra.mxu0 0.0
    %1504 = vmatprep.subr.mxu0 0.0
    %1505 = vmatpush2.msra.mxu0 0.0
    %1506 = vmatprep.subr.mxu0 0.0
    %1507 = vmatpush2.msra.mxu0 0.0
    %1508 = vmatprep.subr.mxu0 0.0
    %1509 = vmatpush2.msra.mxu0 0.0
    %1510 = vmatprep.subr.mxu0 0.0
    %1511 = vmatpush2.msra.mxu0 0.0
    %1512 = vmatprep.subr.mxu0 0.0
    %1513 = vmatpush2.msra.mxu0 0.0
    %1514 = vmatprep.subr.mxu0 0.0
    %1515 = vmatpush2.msra.mxu0 0.0
    %1516 = vmatprep.subr.mxu0 0.0
    %1517 = vmatpush2.msra.mxu0 0.0
    %1518 = vmatprep.subr.mxu0 0.0
    %1519 = vmatpush2.msra.mxu0 0.0
    %1520 = vmatprep.mubr.f32.mxu0 0.0
    %1521 = vmatmul.mubr.f32.gmra.mxu0 %v704
    %v1522 = vpop.f32.mrf.mxu0
    %v1523 = vadd.f32 0.0, %v1522
    %v1524 = vpop.f32.mrf.mxu0
    %1525 = vmatprep.mubr.f32.mxu0 0.0
    %1526 = vmatmul.mubr.f32.gmra.mxu0 %v705
    %v1527 = vpop.f32.mrf.mxu0
    %v1528 = vadd.f32 0.0, %v1527
    %v1529 = vpop.f32.mrf.mxu0
    %1530 = vdwg.mxu0
    %1531 = vst [vmem:[#allocation6] sm:$0xff] %v46
    %1532 = vst [vmem:[#allocation6 + $0x20] sm:$0xff] %v47
    %1533 = vst [vmem:[#allocation6 + $0x40] sm:$0xff] %v48
    %1534 = vst [vmem:[#allocation6 + $0x60] sm:$0xff] %v49
    %1535 = vst [vmem:[#allocation6 + $0x8] sm:$0xff] %v847
    %1536 = vst [vmem:[#allocation6 + $0x28] sm:$0xff] %v852
    %1537 = vst [vmem:[#allocation6 + $0x48] sm:$0xff] %v922
    %1538 = vst [vmem:[#allocation6 + $0x68] sm:$0xff] %v927
    %v1539 = vmul.f32 %v46, %v847
    %v1540 = vmul.f32 %v47, %v852
    %v1541 = vmul.f32 %v48, %v922
    %v1542 = vmul.f32 %v49, %v927
    %1543 = vst [vmem:[#allocation6 + $0x10] sm:$0xff] %v1539
    %1544 = vst [vmem:[#allocation6 + $0x30] sm:$0xff] %v1540
    %1545 = vst [vmem:[#allocation6 + $0x50] sm:$0xff] %v1541
    %1546 = vst [vmem:[#allocation6 + $0x70] sm:$0xff] %v1542
    %v1547 = vmul.f32 %v46, %v1448
    %v1548 = vmul.f32 %v47, %v1453
    %v1549 = vmul.f32 %v48, %v1523
    %v1550 = vmul.f32 %v49, %v1528
    %1551 = vst [vmem:[#allocation6 + $0x18] sm:$0xff] %v1547
    %1552 = vst [vmem:[#allocation6 + $0x38] sm:$0xff] %v1548
    %1553 = vst [vmem:[#allocation6 + $0x58] sm:$0xff] %v1549
    %1554 = vst [vmem:[#allocation6 + $0x78] sm:$0xff] %v1550
    // Predicated region
    $region38: #{tpu_custom_call.1} parent=1 // pred_check
      _
    $region39: #{tpu_custom_call.1} parent=1 // pred_check_branch
      %1556 = sbr.rel (0) target = $region41
    $region40: #{tpu_custom_call.1} parent=1 // pred_region
      %s1558 = ssub.s32 2048, 2048
      %1559 = vsyncadd [#allocation5], %s1558
      %s1560 = sshll.u32 [#allocation6], 4
      %s1561 = int_to_ptr.vmem [resolvable:$true] %s1560
      %1566 = dma.vmem_to_hbm [thread:$0]  %s1561, 2048, %s8, [#allocation5], 512, 512, 32
    $region41: #{tpu_custom_call.1} parent=1 // pred_fallthru
      _
    // Predicated region
    $region42: #{tpu_custom_call.1} parent=1 // pred_check
      _
    $region43: #{tpu_custom_call.1} parent=1 // pred_check_branch
      %1568 = sbr.rel (0) target = $region45
    $region44: #{tpu_custom_call.1} parent=1 // pred_region
      %1569 = dma.done [#allocation5], 2048
    $region45: #{tpu_custom_call.1} parent=1 // pred_fallthru
      _
    %1570 = vsyncpa [#allocation4], 1
    %1571 = vsyncpa [#allocation5], 1

</llo_original>
